<compile_context>
chip_gen: v7x
topology: tpu7x:2x2x1
jax: 0.10.0
libtpu: 0.0.40
codegen_flags: <defaults>
</compile_context>

<pallas_src>
import math
import functools

import jax
import jax.numpy as jnp
from jax import lax
from jax.experimental import pallas as pl
from jax.experimental.pallas import tpu as pltpu


# ----------------------------- Pallas kernel ------------------------------- #
def mha_kernel(k_ref, v_ref, q_ref, bias_ref,
               wk_ref, bk_ref, wv_ref, bv_ref, wq_ref, bq_ref,
               wf_ref, bf_ref,
               o_ref, ctx_ref,
               *, n_head, dim_per_head, compute_dtype, approx_recip, bf16_exp):
    # Blocks (one grid step == one (batch b, query-tile qi)):
    #   k/v_ref : (1, L,  M)      q_ref   : (1, Tq, M)
    #   bias_ref: (1, 1,  L) f32  additive mask (0 / -1e18)
    #   wk/wv/wq/wf_ref : (M, M)  pre-transposed, resident for the whole grid
    #   bk/bv/bq/bf_ref : (1, M)  f32
    #   o_ref   : (1, Tq, M)      ctx_ref : (Tq, M) f32 scratch
    D = dim_per_head
    inv_sqrt_d = jnp.float32(1.0 / math.sqrt(D))

    # Full-width projections, once per (b, qi): K = M and N = M keep the MXU
    # depth/width filled instead of per-head K/N = D matmuls.
    k_proj = jnp.dot(k_ref[0], wk_ref[...],
                     preferred_element_type=jnp.float32) + bk_ref[...]     # (L, M) f32
    v_proj = jnp.dot(v_ref[0], wv_ref[...],
                     preferred_element_type=jnp.float32) + bv_ref[...]     # (L, M) f32
    q_proj = (jnp.dot(q_ref[0], wq_ref[...],
                      preferred_element_type=jnp.float32)
              + bq_ref[...]) * inv_sqrt_d                                  # (Tq, M) f32

    k_c = k_proj.astype(compute_dtype)
    v_c = v_proj.astype(compute_dtype)
    q_c = q_proj.astype(compute_dtype)

    bias_row = bias_ref[0]                                                 # (1, L) f32

    # Per-head attention: static (compile-time) loop so every slice below is a
    # static lane slice.  Per-head context is assembled into the (Tq, M)
    # scratch so the output projection is one full-width matmul.
    for h in range(n_head):
        lo = h * D
        qh = q_c[:, lo:lo + D]                                             # (Tq, D)
        kh = k_c[:, lo:lo + D]                                             # (L,  D)
        vh = v_c[:, lo:lo + D]                                             # (L,  D)

        # scores = qh @ kh^T expressed via contracting dims (no explicit
        # transpose materialized; MXU consumes the "NT" form directly).
        scores = lax.dot_general(
            qh, kh, dimension_numbers=(((1,), (1,)), ((), ())),
            preferred_element_type=jnp.float32)                            # (Tq, L) f32
        scores = scores + bias_row                                         # masked -> -1e18

        # Numerically-stable softmax; max/sum/renorm stay in f32.
        m = jnp.max(scores, axis=-1, keepdims=True)
        z = scores - m
        if bf16_exp:
            e = jnp.exp(z.astype(compute_dtype))        # bf16 EUP exp (v6e/v7x only)
        else:
            e = jnp.exp(z)
        s = jnp.sum(e, axis=-1, keepdims=True, dtype=jnp.float32)
        attn = e.astype(jnp.float32) * pl.reciprocal(s, approx=approx_recip)
        # TODO(synk): dropout on attn is identity (eval mode); RNG-matched
        # training-mode dropout vs. PyTorch is not reproduced here.

        ctx_ref[:, lo:lo + D] = jnp.dot(attn.astype(compute_dtype), vh,
                                        preferred_element_type=jnp.float32)  # (Tq, D)

    # Single full-width output projection: (Tq, M) @ (M, M).
    out = jnp.dot(ctx_ref[...].astype(compute_dtype), wf_ref[...],
                  preferred_element_type=jnp.float32) + bf_ref[...]
    o_ref[0] = out.astype(o_ref.dtype)


# ------------------------------ host wrapper -------------------------------- #
def _default_vmem_limit_bytes():
    """Generation-aware VMEM limit (~3/4 of physical: v5e/v6e 96 MiB, v7x 48 MiB)."""
    try:
        cap = int(pltpu.get_tpu_info().vmem_capacity_bytes)
        return max(32 * 1024 * 1024, (cap * 3) // 4)
    except Exception:
        return 64 * 1024 * 1024


def multi_headed_attention(key, value, query, mask, params, *, n_head,
                           compute_dtype=jnp.bfloat16, q_tile=256,
                           out_dtype=jnp.float32, bf16_exp=False,
                           vmem_limit_bytes=None):
    """key/value/query: (B, L, M); mask: (B, 1, L) with nonzero == masked."""
    B, L, M = key.shape
    assert M % n_head == 0
    D = M // n_head
    cdt = jnp.dtype(compute_dtype)
    odt = jnp.dtype(out_dtype)

    if vmem_limit_bytes is None:
        vmem_limit_bytes = _default_vmem_limit_bytes()

    # Additive mask bias computed once on the host (0 where visible, -1e18
    # where masked) -> no per-step compare/select inside the kernel.
    if mask is None:
        mask_bias = jnp.zeros((B, 1, L), jnp.float32)
    else:
        mask_bias = jnp.where(mask != 0, jnp.float32(-1e18), jnp.float32(0.0))
        mask_bias = mask_bias.astype(jnp.float32)

    wk, bk, wv, bv, wq, bq, wf, bf = params

    # Pre-transpose the full (M, M) weights once on the host; they stay
    # resident in VMEM for the whole grid (constant index_maps below).
    wk_t = wk.T.astype(cdt)
    wv_t = wv.T.astype(cdt)
    wq_t = wq.T.astype(cdt)
    wf_t = wf.T.astype(cdt)
    bk2 = bk.reshape(1, M).astype(jnp.float32)
    bv2 = bv.reshape(1, M).astype(jnp.float32)
    bq2 = bq.reshape(1, M).astype(jnp.float32)
    bf2 = bf.reshape(1, M).astype(jnp.float32)

    key = key.astype(cdt)
    value = value.astype(cdt)
    query = query.astype(cdt)

    # Tile the query dimension (bounds per-step VMEM, adds a second parallel
    # grid axis so both v7x TensorCores get work when B is small).
    Tq = L if L <= q_tile else q_tile
    assert L % Tq == 0, "seq length must be a multiple of the query tile"
    Qt = L // Tq

    kv_spec = pl.BlockSpec((1, L, M), lambda b, qi: (b, 0, 0))
    q_spec = pl.BlockSpec((1, Tq, M), lambda b, qi: (b, qi, 0))
    bias_spec = pl.BlockSpec((1, 1, L), lambda b, qi: (b, 0, 0))
    w_spec = pl.BlockSpec((M, M), lambda b, qi: (0, 0))       # resident weights
    b_spec = pl.BlockSpec((1, M), lambda b, qi: (0, 0))
    out_spec = pl.BlockSpec((1, Tq, M), lambda b, qi: (b, qi, 0))

    kernel = functools.partial(
        mha_kernel,
        n_head=n_head,
        dim_per_head=D,
        compute_dtype=cdt,
        approx_recip=bool(cdt == jnp.dtype(jnp.bfloat16)),
        bf16_exp=bool(bf16_exp))

    return pl.pallas_call(
        kernel,
        out_shape=jax.ShapeDtypeStruct((B, L, M), odt),
        grid_spec=pltpu.PrefetchScalarGridSpec(
            num_scalar_prefetch=0,
            grid=(B, Qt),
            in_specs=[kv_spec, kv_spec, q_spec, bias_spec,
                      w_spec, b_spec, w_spec, b_spec, w_spec, b_spec,
                      w_spec, b_spec],
            out_specs=out_spec,
            scratch_shapes=[pltpu.VMEM((Tq, M), jnp.float32)],
        ),
        compiler_params=pltpu.CompilerParams(
            dimension_semantics=("parallel", "parallel"),
            vmem_limit_bytes=int(vmem_limit_bytes)),
    )(key, value, query, mask_bias,
      wk_t, bk2, wv_t, bv2, wq_t, bq2, wf_t, bf2)


# --------------------------- reference (plain JAX) --------------------------- #
def reference_mha(key, value, query, mask, params, *, n_head):
    B, L, M = key.shape
    D = M // n_head
    wk, bk, wv, bv, wq, bq, wf, bf = params

    def shape(x):
        return x.reshape(B, L, n_head, D).transpose(0, 2, 1, 3)

    K = shape(key @ wk.T + bk)
    V = shape(value @ wv.T + bv)
    Q = shape(query @ wq.T + bq) / math.sqrt(D)
    scores = jnp.einsum('bhqd,bhkd->bhqk', Q, K)
    m = (mask[:, None, :, :] != 0)           # (B,1,1,L)
    scores = jnp.where(m, -1e18, scores)
    attn = jax.nn.softmax(scores, axis=-1)
    ctx = jnp.einsum('bhqk,bhkd->bhqd', attn, V)
    ctx = ctx.transpose(0, 2, 1, 3).reshape(B, L, M)
    return ctx @ wf.T + bf


# ---------------------------------- main ------------------------------------ #
if __name__ == "__main__":
    B, L, M, H = 2, 8, 32, 4          # batch, seq, model_size, n_head

    root = jax.random.PRNGKey(0)
    keys = jax.random.split(root, 12)

    scale = 1.0 / math.sqrt(M)
    wk = jax.random.uniform(keys[0], (M, M), jnp.float32, -scale, scale)
    bk = jax.random.uniform(keys[1], (M,), jnp.float32, -scale, scale)
    wv = jax.random.uniform(keys[2], (M, M), jnp.float32, -scale, scale)
    bv = jax.random.uniform(keys[3], (M,), jnp.float32, -scale, scale)
    wq = jax.random.uniform(keys[4], (M, M), jnp.float32, -scale, scale)
    bq = jax.random.uniform(keys[5], (M,), jnp.float32, -scale, scale)
    wf = jax.random.uniform(keys[6], (M, M), jnp.float32, -scale, scale)
    bf = jax.random.uniform(keys[7], (M,), jnp.float32, -scale, scale)
    params = (wk, bk, wv, bv, wq, bq, wf, bf)

    key_in = jax.random.normal(keys[8], (B, L, M), jnp.float32)
    value_in = jax.random.normal(keys[9], (B, L, M), jnp.float32)
    query_in = jax.random.normal(keys[10], (B, L, M), jnp.float32)
    # mask: mark last two positions of each sequence as padded
    mask = jnp.zeros((B, 1, L), jnp.int32).at[:, :, -2:].set(1)

    ref = reference_mha(key_in, value_in, query_in, mask, params, n_head=H)

    # Exact-precision path (float32 end-to-end) — tight correctness check.
    out_f32 = multi_headed_attention(key_in, value_in, query_in, mask, params,
                                     n_head=H, compute_dtype=jnp.float32,
                                     out_dtype=jnp.float32)
    out_f32 = jax.block_until_ready(out_f32)
    assert out_f32.shape == (B, L, M)
    assert jnp.allclose(out_f32, ref, atol=1e-4, rtol=1e-4), "f32 mismatch vs JAX reference"

    # Fast path: bf16 MXU inputs + bf16 writeback, f32 accumulation / softmax.
    out_bf16 = multi_headed_attention(key_in, value_in, query_in, mask, params,
                                      n_head=H, compute_dtype=jnp.bfloat16,
                                      out_dtype=jnp.bfloat16)
    out_bf16 = jax.block_until_ready(out_bf16)
    assert out_bf16.shape == (B, L, M)
    assert jnp.allclose(out_bf16.astype(jnp.float32), ref,
                        atol=1e-1, rtol=1e-1), "bf16 mismatch vs JAX reference"

    print("KERNEL_OK")
</pallas_src>

<mosaic_0001>
module attributes {stable_mosaic.version = 11 : i64} {
  func.func @mha_kernel(%arg0: i32, %arg1: i32, %arg2: memref<1x8x32xf32, #tpu.memory_space<vmem>>, %arg3: memref<1x8x32xf32, #tpu.memory_space<vmem>>, %arg4: memref<1x8x32xf32, #tpu.memory_space<vmem>>, %arg5: memref<1x1x8xf32, #tpu.memory_space<vmem>>, %arg6: memref<32x32xf32, #tpu.memory_space<vmem>>, %arg7: memref<1x32xf32, #tpu.memory_space<vmem>>, %arg8: memref<32x32xf32, #tpu.memory_space<vmem>>, %arg9: memref<1x32xf32, #tpu.memory_space<vmem>>, %arg10: memref<32x32xf32, #tpu.memory_space<vmem>>, %arg11: memref<1x32xf32, #tpu.memory_space<vmem>>, %arg12: memref<32x32xf32, #tpu.memory_space<vmem>>, %arg13: memref<1x32xf32, #tpu.memory_space<vmem>>, %arg14: memref<1x8x32xf32, #tpu.memory_space<vmem>>, %arg15: memref<8x32xf32, #tpu.memory_space<vmem>>) attributes {dimension_semantics = [#tpu.dimension_semantics<parallel>, #tpu.dimension_semantics<parallel>], iteration_bounds = array<i64: 2, 1>, scalar_prefetch = 0 : i64, scratch_operands = 1 : i64, tpu.core_type = #tpu.core_type<tc>, window_params = [{transform_indices = @transform_0, window_bounds = array<i64: 1, 8, 32>}, {transform_indices = @transform_1, window_bounds = array<i64: 1, 8, 32>}, {transform_indices = @transform_2, window_bounds = array<i64: 1, 8, 32>}, {transform_indices = @transform_3, window_bounds = array<i64: 1, 1, 8>}, {pipeline_mode = #tpu.pipeline_mode<synchronous>, transform_indices = @transform_4, window_bounds = array<i64: 32, 32>}, {pipeline_mode = #tpu.pipeline_mode<synchronous>, transform_indices = @transform_5, window_bounds = array<i64: 1, 32>}, {pipeline_mode = #tpu.pipeline_mode<synchronous>, transform_indices = @transform_6, window_bounds = array<i64: 32, 32>}, {pipeline_mode = #tpu.pipeline_mode<synchronous>, transform_indices = @transform_7, window_bounds = array<i64: 1, 32>}, {pipeline_mode = #tpu.pipeline_mode<synchronous>, transform_indices = @transform_8, window_bounds = array<i64: 32, 32>}, {pipeline_mode = #tpu.pipeline_mode<synchronous>, transform_indices = @transform_9, window_bounds = array<i64: 1, 32>}, {pipeline_mode = #tpu.pipeline_mode<synchronous>, transform_indices = @transform_10, window_bounds = array<i64: 32, 32>}, {pipeline_mode = #tpu.pipeline_mode<synchronous>, transform_indices = @transform_11, window_bounds = array<i64: 1, 32>}, {transform_indices = @transform_12, window_bounds = array<i64: 1, 8, 32>}]} {
    %c0 = arith.constant 0 : index
    %c0_0 = arith.constant 0 : index
    %c0_1 = arith.constant 0 : index
    %0 = vector.load %arg2[%c0, %c0_0, %c0_1] : memref<1x8x32xf32, #tpu.memory_space<vmem>>, vector<1x8x32xf32>
    %1 = vector.shape_cast %0 : vector<1x8x32xf32> to vector<8x32xf32>
    %c0_2 = arith.constant 0 : index
    %c0_3 = arith.constant 0 : index
    %2 = vector.load %arg6[%c0_2, %c0_3] : memref<32x32xf32, #tpu.memory_space<vmem>>, vector<32x32xf32>
    %cst = arith.constant dense<0.000000e+00> : vector<8x32xf32>
    %3 = tpu.matmul %1, %2, %cst {dimension_numbers = #tpu.dot_dimension_numbers<[1], [0], [0], [1], [0, 0, 1, 1], [], []>} : vector<8x32xf32>, vector<32x32xf32>, vector<8x32xf32> -> vector<8x32xf32>
    %c0_4 = arith.constant 0 : index
    %c0_5 = arith.constant 0 : index
    %4 = vector.load %arg7[%c0_4, %c0_5] : memref<1x32xf32, #tpu.memory_space<vmem>>, vector<1x32xf32>
    %5 = vector.broadcast %4 : vector<1x32xf32> to vector<8x32xf32>
    %6 = arith.addf %3, %5 : vector<8x32xf32>
    %c0_6 = arith.constant 0 : index
    %c0_7 = arith.constant 0 : index
    %c0_8 = arith.constant 0 : index
    %7 = vector.load %arg3[%c0_6, %c0_7, %c0_8] : memref<1x8x32xf32, #tpu.memory_space<vmem>>, vector<1x8x32xf32>
    %8 = vector.shape_cast %7 : vector<1x8x32xf32> to vector<8x32xf32>
    %c0_9 = arith.constant 0 : index
    %c0_10 = arith.constant 0 : index
    %9 = vector.load %arg8[%c0_9, %c0_10] : memref<32x32xf32, #tpu.memory_space<vmem>>, vector<32x32xf32>
    %cst_11 = arith.constant dense<0.000000e+00> : vector<8x32xf32>
    %10 = tpu.matmul %8, %9, %cst_11 {dimension_numbers = #tpu.dot_dimension_numbers<[1], [0], [0], [1], [0, 0, 1, 1], [], []>} : vector<8x32xf32>, vector<32x32xf32>, vector<8x32xf32> -> vector<8x32xf32>
    %c0_12 = arith.constant 0 : index
    %c0_13 = arith.constant 0 : index
    %11 = vector.load %arg9[%c0_12, %c0_13] : memref<1x32xf32, #tpu.memory_space<vmem>>, vector<1x32xf32>
    %12 = vector.broadcast %11 : vector<1x32xf32> to vector<8x32xf32>
    %13 = arith.addf %10, %12 : vector<8x32xf32>
    %c0_14 = arith.constant 0 : index
    %c0_15 = arith.constant 0 : index
    %c0_16 = arith.constant 0 : index
    %14 = vector.load %arg4[%c0_14, %c0_15, %c0_16] : memref<1x8x32xf32, #tpu.memory_space<vmem>>, vector<1x8x32xf32>
    %15 = vector.shape_cast %14 : vector<1x8x32xf32> to vector<8x32xf32>
    %c0_17 = arith.constant 0 : index
    %c0_18 = arith.constant 0 : index
    %16 = vector.load %arg10[%c0_17, %c0_18] : memref<32x32xf32, #tpu.memory_space<vmem>>, vector<32x32xf32>
    %cst_19 = arith.constant dense<0.000000e+00> : vector<8x32xf32>
    %17 = tpu.matmul %15, %16, %cst_19 {dimension_numbers = #tpu.dot_dimension_numbers<[1], [0], [0], [1], [0, 0, 1, 1], [], []>} : vector<8x32xf32>, vector<32x32xf32>, vector<8x32xf32> -> vector<8x32xf32>
    %c0_20 = arith.constant 0 : index
    %c0_21 = arith.constant 0 : index
    %18 = vector.load %arg11[%c0_20, %c0_21] : memref<1x32xf32, #tpu.memory_space<vmem>>, vector<1x32xf32>
    %19 = vector.broadcast %18 : vector<1x32xf32> to vector<8x32xf32>
    %20 = arith.addf %17, %19 : vector<8x32xf32>
    %cst_22 = arith.constant 0.353553385 : f32
    %21 = vector.broadcast %cst_22 : f32 to vector<8x32xf32>
    %22 = arith.mulf %20, %21 : vector<8x32xf32>
    %c0_23 = arith.constant 0 : index
    %c0_24 = arith.constant 0 : index
    %c0_25 = arith.constant 0 : index
    %23 = vector.load %arg5[%c0_23, %c0_24, %c0_25] : memref<1x1x8xf32, #tpu.memory_space<vmem>>, vector<1x1x8xf32>
    %24 = vector.shape_cast %23 : vector<1x1x8xf32> to vector<1x8xf32>
    %25 = vector.extract_strided_slice %22 {offsets = [0, 0], sizes = [8, 8], strides = [1, 1]} : vector<8x32xf32> to vector<8x8xf32>
    %26 = vector.extract_strided_slice %6 {offsets = [0, 0], sizes = [8, 8], strides = [1, 1]} : vector<8x32xf32> to vector<8x8xf32>
    %27 = vector.extract_strided_slice %13 {offsets = [0, 0], sizes = [8, 8], strides = [1, 1]} : vector<8x32xf32> to vector<8x8xf32>
    %cst_26 = arith.constant dense<0.000000e+00> : vector<8x8xf32>
    %28 = tpu.matmul %25, %26, %cst_26 {dimension_numbers = #tpu.dot_dimension_numbers<[1], [1], [0], [0], [0, 0, 1, 0], [], []>} : vector<8x8xf32>, vector<8x8xf32>, vector<8x8xf32> -> vector<8x8xf32>
    %29 = vector.broadcast %24 : vector<1x8xf32> to vector<8x8xf32>
    %30 = arith.addf %28, %29 : vector<8x8xf32>
    %cst_27 = arith.constant dense<0xFF800000> : vector<8xf32>
    %31 = vector.multi_reduction <maximumf>, %30, %cst_27 [1] : vector<8x8xf32> to vector<8xf32>
    %32 = vector.shape_cast %31 : vector<8xf32> to vector<8x1xf32>
    %33 = vector.broadcast %32 : vector<8x1xf32> to vector<8x8xf32>
    %34 = arith.subf %30, %33 : vector<8x8xf32>
    %35 = math.exp %34 : vector<8x8xf32>
    %cst_28 = arith.constant dense<0.000000e+00> : vector<8xf32>
    %36 = vector.multi_reduction <add>, %35, %cst_28 [1] : vector<8x8xf32> to vector<8xf32>
    %37 = vector.shape_cast %36 : vector<8xf32> to vector<8x1xf32>
    %38 = tpu.reciprocal %37 : vector<8x1xf32> -> vector<8x1xf32>
    %39 = vector.broadcast %38 : vector<8x1xf32> to vector<8x8xf32>
    %40 = arith.mulf %35, %39 : vector<8x8xf32>
    %cst_29 = arith.constant dense<0.000000e+00> : vector<8x8xf32>
    %41 = tpu.matmul %40, %27, %cst_29 {dimension_numbers = #tpu.dot_dimension_numbers<[1], [0], [0], [1], [0, 0, 1, 1], [], []>} : vector<8x8xf32>, vector<8x8xf32>, vector<8x8xf32> -> vector<8x8xf32>
    %c0_30 = arith.constant 0 : index
    %c0_31 = arith.constant 0 : index
    %42 = vector.load %arg15[%c0_30, %c0_31] : memref<8x32xf32, #tpu.memory_space<vmem>>, vector<8x8xf32>
    tpu.vector_store %arg15[%c0_30, %c0_31], %41 {strides = array<i32>} : memref<8x32xf32, #tpu.memory_space<vmem>>, vector<8x8xf32>,
    %43 = vector.extract_strided_slice %22 {offsets = [0, 8], sizes = [8, 8], strides = [1, 1]} : vector<8x32xf32> to vector<8x8xf32>
    %44 = vector.extract_strided_slice %6 {offsets = [0, 8], sizes = [8, 8], strides = [1, 1]} : vector<8x32xf32> to vector<8x8xf32>
    %45 = vector.extract_strided_slice %13 {offsets = [0, 8], sizes = [8, 8], strides = [1, 1]} : vector<8x32xf32> to vector<8x8xf32>
    %cst_32 = arith.constant dense<0.000000e+00> : vector<8x8xf32>
    %46 = tpu.matmul %43, %44, %cst_32 {dimension_numbers = #tpu.dot_dimension_numbers<[1], [1], [0], [0], [0, 0, 1, 0], [], []>} : vector<8x8xf32>, vector<8x8xf32>, vector<8x8xf32> -> vector<8x8xf32>
    %47 = vector.broadcast %24 : vector<1x8xf32> to vector<8x8xf32>
    %48 = arith.addf %46, %47 : vector<8x8xf32>
    %cst_33 = arith.constant dense<0xFF800000> : vector<8xf32>
    %49 = vector.multi_reduction <maximumf>, %48, %cst_33 [1] : vector<8x8xf32> to vector<8xf32>
    %50 = vector.shape_cast %49 : vector<8xf32> to vector<8x1xf32>
    %51 = vector.broadcast %50 : vector<8x1xf32> to vector<8x8xf32>
    %52 = arith.subf %48, %51 : vector<8x8xf32>
    %53 = math.exp %52 : vector<8x8xf32>
    %cst_34 = arith.constant dense<0.000000e+00> : vector<8xf32>
    %54 = vector.multi_reduction <add>, %53, %cst_34 [1] : vector<8x8xf32> to vector<8xf32>
    %55 = vector.shape_cast %54 : vector<8xf32> to vector<8x1xf32>
    %56 = tpu.reciprocal %55 : vector<8x1xf32> -> vector<8x1xf32>
    %57 = vector.broadcast %56 : vector<8x1xf32> to vector<8x8xf32>
    %58 = arith.mulf %53, %57 : vector<8x8xf32>
    %cst_35 = arith.constant dense<0.000000e+00> : vector<8x8xf32>
    %59 = tpu.matmul %58, %45, %cst_35 {dimension_numbers = #tpu.dot_dimension_numbers<[1], [0], [0], [1], [0, 0, 1, 1], [], []>} : vector<8x8xf32>, vector<8x8xf32>, vector<8x8xf32> -> vector<8x8xf32>
    %c0_36 = arith.constant 0 : index
    %c8 = arith.constant 8 : index
    %60 = vector.load %arg15[%c0_36, %c8] : memref<8x32xf32, #tpu.memory_space<vmem>>, vector<8x8xf32>
    tpu.vector_store %arg15[%c0_36, %c8], %59 {strides = array<i32>} : memref<8x32xf32, #tpu.memory_space<vmem>>, vector<8x8xf32>,
    %61 = vector.extract_strided_slice %22 {offsets = [0, 16], sizes = [8, 8], strides = [1, 1]} : vector<8x32xf32> to vector<8x8xf32>
    %62 = vector.extract_strided_slice %6 {offsets = [0, 16], sizes = [8, 8], strides = [1, 1]} : vector<8x32xf32> to vector<8x8xf32>
    %63 = vector.extract_strided_slice %13 {offsets = [0, 16], sizes = [8, 8], strides = [1, 1]} : vector<8x32xf32> to vector<8x8xf32>
    %cst_37 = arith.constant dense<0.000000e+00> : vector<8x8xf32>
    %64 = tpu.matmul %61, %62, %cst_37 {dimension_numbers = #tpu.dot_dimension_numbers<[1], [1], [0], [0], [0, 0, 1, 0], [], []>} : vector<8x8xf32>, vector<8x8xf32>, vector<8x8xf32> -> vector<8x8xf32>
    %65 = vector.broadcast %24 : vector<1x8xf32> to vector<8x8xf32>
    %66 = arith.addf %64, %65 : vector<8x8xf32>
    %cst_38 = arith.constant dense<0xFF800000> : vector<8xf32>
    %67 = vector.multi_reduction <maximumf>, %66, %cst_38 [1] : vector<8x8xf32> to vector<8xf32>
    %68 = vector.shape_cast %67 : vector<8xf32> to vector<8x1xf32>
    %69 = vector.broadcast %68 : vector<8x1xf32> to vector<8x8xf32>
    %70 = arith.subf %66, %69 : vector<8x8xf32>
    %71 = math.exp %70 : vector<8x8xf32>
    %cst_39 = arith.constant dense<0.000000e+00> : vector<8xf32>
    %72 = vector.multi_reduction <add>, %71, %cst_39 [1] : vector<8x8xf32> to vector<8xf32>
    %73 = vector.shape_cast %72 : vector<8xf32> to vector<8x1xf32>
    %74 = tpu.reciprocal %73 : vector<8x1xf32> -> vector<8x1xf32>
    %75 = vector.broadcast %74 : vector<8x1xf32> to vector<8x8xf32>
    %76 = arith.mulf %71, %75 : vector<8x8xf32>
    %cst_40 = arith.constant dense<0.000000e+00> : vector<8x8xf32>
    %77 = tpu.matmul %76, %63, %cst_40 {dimension_numbers = #tpu.dot_dimension_numbers<[1], [0], [0], [1], [0, 0, 1, 1], [], []>} : vector<8x8xf32>, vector<8x8xf32>, vector<8x8xf32> -> vector<8x8xf32>
    %c0_41 = arith.constant 0 : index
    %c16 = arith.constant 16 : index
    %78 = vector.load %arg15[%c0_41, %c16] : memref<8x32xf32, #tpu.memory_space<vmem>>, vector<8x8xf32>
    tpu.vector_store %arg15[%c0_41, %c16], %77 {strides = array<i32>} : memref<8x32xf32, #tpu.memory_space<vmem>>, vector<8x8xf32>,
    %79 = vector.extract_strided_slice %22 {offsets = [0, 24], sizes = [8, 8], strides = [1, 1]} : vector<8x32xf32> to vector<8x8xf32>
    %80 = vector.extract_strided_slice %6 {offsets = [0, 24], sizes = [8, 8], strides = [1, 1]} : vector<8x32xf32> to vector<8x8xf32>
    %81 = vector.extract_strided_slice %13 {offsets = [0, 24], sizes = [8, 8], strides = [1, 1]} : vector<8x32xf32> to vector<8x8xf32>
    %cst_42 = arith.constant dense<0.000000e+00> : vector<8x8xf32>
    %82 = tpu.matmul %79, %80, %cst_42 {dimension_numbers = #tpu.dot_dimension_numbers<[1], [1], [0], [0], [0, 0, 1, 0], [], []>} : vector<8x8xf32>, vector<8x8xf32>, vector<8x8xf32> -> vector<8x8xf32>
    %83 = vector.broadcast %24 : vector<1x8xf32> to vector<8x8xf32>
    %84 = arith.addf %82, %83 : vector<8x8xf32>
    %cst_43 = arith.constant dense<0xFF800000> : vector<8xf32>
    %85 = vector.multi_reduction <maximumf>, %84, %cst_43 [1] : vector<8x8xf32> to vector<8xf32>
    %86 = vector.shape_cast %85 : vector<8xf32> to vector<8x1xf32>
    %87 = vector.broadcast %86 : vector<8x1xf32> to vector<8x8xf32>
    %88 = arith.subf %84, %87 : vector<8x8xf32>
    %89 = math.exp %88 : vector<8x8xf32>
    %cst_44 = arith.constant dense<0.000000e+00> : vector<8xf32>
    %90 = vector.multi_reduction <add>, %89, %cst_44 [1] : vector<8x8xf32> to vector<8xf32>
    %91 = vector.shape_cast %90 : vector<8xf32> to vector<8x1xf32>
    %92 = tpu.reciprocal %91 : vector<8x1xf32> -> vector<8x1xf32>
    %93 = vector.broadcast %92 : vector<8x1xf32> to vector<8x8xf32>
    %94 = arith.mulf %89, %93 : vector<8x8xf32>
    %cst_45 = arith.constant dense<0.000000e+00> : vector<8x8xf32>
    %95 = tpu.matmul %94, %81, %cst_45 {dimension_numbers = #tpu.dot_dimension_numbers<[1], [0], [0], [1], [0, 0, 1, 1], [], []>} : vector<8x8xf32>, vector<8x8xf32>, vector<8x8xf32> -> vector<8x8xf32>
    %c0_46 = arith.constant 0 : index
    %c24 = arith.constant 24 : index
    %96 = vector.load %arg15[%c0_46, %c24] : memref<8x32xf32, #tpu.memory_space<vmem>>, vector<8x8xf32>
    tpu.vector_store %arg15[%c0_46, %c24], %95 {strides = array<i32>} : memref<8x32xf32, #tpu.memory_space<vmem>>, vector<8x8xf32>,
    %c0_47 = arith.constant 0 : index
    %c0_48 = arith.constant 0 : index
    %97 = vector.load %arg15[%c0_47, %c0_48] : memref<8x32xf32, #tpu.memory_space<vmem>>, vector<8x32xf32>
    %c0_49 = arith.constant 0 : index
    %c0_50 = arith.constant 0 : index
    %98 = vector.load %arg12[%c0_49, %c0_50] : memref<32x32xf32, #tpu.memory_space<vmem>>, vector<32x32xf32>
    %cst_51 = arith.constant dense<0.000000e+00> : vector<8x32xf32>
    %99 = tpu.matmul %97, %98, %cst_51 {dimension_numbers = #tpu.dot_dimension_numbers<[1], [0], [0], [1], [0, 0, 1, 1], [], []>} : vector<8x32xf32>, vector<32x32xf32>, vector<8x32xf32> -> vector<8x32xf32>
    %c0_52 = arith.constant 0 : index
    %c0_53 = arith.constant 0 : index
    %100 = vector.load %arg13[%c0_52, %c0_53] : memref<1x32xf32, #tpu.memory_space<vmem>>, vector<1x32xf32>
    %101 = vector.broadcast %100 : vector<1x32xf32> to vector<8x32xf32>
    %102 = arith.addf %99, %101 : vector<8x32xf32>
    %c0_54 = arith.constant 0 : index
    %c0_55 = arith.constant 0 : index
    %c0_56 = arith.constant 0 : index
    %103 = vector.load %arg14[%c0_54, %c0_55, %c0_56] : memref<1x8x32xf32, #tpu.memory_space<vmem>>, vector<1x8x32xf32>
    %104 = vector.shape_cast %103 : vector<1x8x32xf32> to vector<8x32xf32>
    %105 = vector.shape_cast %102 : vector<8x32xf32> to vector<1x8x32xf32>
    tpu.vector_store %arg14[%c0_54, %c0_55, %c0_56], %105 {strides = array<i32>} : memref<1x8x32xf32, #tpu.memory_space<vmem>>, vector<1x8x32xf32>,
    return
  }
  func.func @transform_0(%arg0: i32, %arg1: i32) -> (i32, i32, i32) {
    %c0_i32 = arith.constant 0 : i32
    %c0_i32_0 = arith.constant 0 : i32
    %c0_i32_1 = arith.constant 0 : i32
    return %arg0, %c0_i32, %c0_i32_0 : i32, i32, i32
  }
  func.func @transform_1(%arg0: i32, %arg1: i32) -> (i32, i32, i32) {
    %c0_i32 = arith.constant 0 : i32
    %c0_i32_0 = arith.constant 0 : i32
    %c0_i32_1 = arith.constant 0 : i32
    return %arg0, %c0_i32, %c0_i32_0 : i32, i32, i32
  }
  func.func @transform_2(%arg0: i32, %arg1: i32) -> (i32, i32, i32) {
    %c0_i32 = arith.constant 0 : i32
    %c0_i32_0 = arith.constant 0 : i32
    return %arg0, %arg1, %c0_i32 : i32, i32, i32
  }
  func.func @transform_3(%arg0: i32, %arg1: i32) -> (i32, i32, i32) {
    %c0_i32 = arith.constant 0 : i32
    %c0_i32_0 = arith.constant 0 : i32
    %c0_i32_1 = arith.constant 0 : i32
    return %arg0, %c0_i32, %c0_i32_0 : i32, i32, i32
  }
  func.func @transform_4(%arg0: i32, %arg1: i32) -> (i32, i32) {
    %c0_i32 = arith.constant 0 : i32
    %c0_i32_0 = arith.constant 0 : i32
    %c0_i32_1 = arith.constant 0 : i32
    return %c0_i32, %c0_i32_0 : i32, i32
  }
  func.func @transform_5(%arg0: i32, %arg1: i32) -> (i32, i32) {
    %c0_i32 = arith.constant 0 : i32
    %c0_i32_0 = arith.constant 0 : i32
    %c0_i32_1 = arith.constant 0 : i32
    return %c0_i32, %c0_i32_0 : i32, i32
  }
  func.func @transform_6(%arg0: i32, %arg1: i32) -> (i32, i32) {
    %c0_i32 = arith.constant 0 : i32
    %c0_i32_0 = arith.constant 0 : i32
    %c0_i32_1 = arith.constant 0 : i32
    return %c0_i32, %c0_i32_0 : i32, i32
  }
  func.func @transform_7(%arg0: i32, %arg1: i32) -> (i32, i32) {
    %c0_i32 = arith.constant 0 : i32
    %c0_i32_0 = arith.constant 0 : i32
    %c0_i32_1 = arith.constant 0 : i32
    return %c0_i32, %c0_i32_0 : i32, i32
  }
  func.func @transform_8(%arg0: i32, %arg1: i32) -> (i32, i32) {
    %c0_i32 = arith.constant 0 : i32
    %c0_i32_0 = arith.constant 0 : i32
    %c0_i32_1 = arith.constant 0 : i32
    return %c0_i32, %c0_i32_0 : i32, i32
  }
  func.func @transform_9(%arg0: i32, %arg1: i32) -> (i32, i32) {
    %c0_i32 = arith.constant 0 : i32
    %c0_i32_0 = arith.constant 0 : i32
    %c0_i32_1 = arith.constant 0 : i32
    return %c0_i32, %c0_i32_0 : i32, i32
  }
  func.func @transform_10(%arg0: i32, %arg1: i32) -> (i32, i32) {
    %c0_i32 = arith.constant 0 : i32
    %c0_i32_0 = arith.constant 0 : i32
    %c0_i32_1 = arith.constant 0 : i32
    return %c0_i32, %c0_i32_0 : i32, i32
  }
  func.func @transform_11(%arg0: i32, %arg1: i32) -> (i32, i32) {
    %c0_i32 = arith.constant 0 : i32
    %c0_i32_0 = arith.constant 0 : i32
    %c0_i32_1 = arith.constant 0 : i32
    return %c0_i32, %c0_i32_0 : i32, i32
  }
  func.func @transform_12(%arg0: i32, %arg1: i32) -> (i32, i32, i32) {
    %c0_i32 = arith.constant 0 : i32
    %c0_i32_0 = arith.constant 0 : i32
    return %arg0, %arg1, %c0_i32 : i32, i32, i32
  }
}

</mosaic_0001>

<llo_original>
// kernel: tpu_custom_call.1
$region0: #{tpu_custom_call.1}
  #allocation0 [shape = 'u32[]', space=smem, size = 0x4, offset = 0x4, fixed_abs, tag = 'smem constant byte address 0x4 - core index']
  #allocation1 [shape = 'u32[144,128]{1,0:T(1,128)}', space=vmem, size = 0x12000, scoped, tag = 'internal scratch']
  #allocation2 [shape = 'f32[8,32]{1,0:T(8,128)}', space=vmem, size = 0x1000, scoped, tag = 'scratch operand']
  %s0 = inlined_call_operand.hbm [shape: f32[2,8,32], index: 0, kind: input, shape index: {}]
  %s1 = inlined_call_operand.hbm [shape: f32[2,8,32], index: 1, kind: input, shape index: {}]
  %s2 = inlined_call_operand.hbm [shape: f32[2,8,32], index: 2, kind: input, shape index: {}]
  %s3 = inlined_call_operand.hbm [shape: f32[2,1,8], index: 3, kind: input, shape index: {}]
  %s4 = inlined_call_operand.hbm [shape: f32[32,32], index: 4, kind: input, shape index: {}]
  %s5 = inlined_call_operand.hbm [shape: f32[1,32], index: 5, kind: input, shape index: {}]
  %s6 = inlined_call_operand.hbm [shape: f32[32,32], index: 6, kind: input, shape index: {}]
  %s7 = inlined_call_operand.hbm [shape: f32[1,32], index: 7, kind: input, shape index: {}]
  %s8 = inlined_call_operand.hbm [shape: f32[32,32], index: 8, kind: input, shape index: {}]
  %s9 = inlined_call_operand.hbm [shape: f32[1,32], index: 9, kind: input, shape index: {}]
  %s10 = inlined_call_operand.hbm [shape: f32[32,32], index: 10, kind: input, shape index: {}]
  %s11 = inlined_call_operand.hbm [shape: f32[1,32], index: 11, kind: input, shape index: {}]
  %s12 = inlined_call_operand.hbm [shape: f32[2,8,32], index: 12, kind: output, shape index: {}]
  %s13 = sld [smem:[#allocation0]]
  $region129: #{tpu_custom_call.1} parent=0
    _
  %s15 = ssub.s32 1, %s13
  %s16 = scalar_select 0, %s15, %s13
  $region1: #{tpu_custom_call.1} parent=0
    #allocation3 [shape = 'u8[8192]{0}', space=vmem, size = 0x2000, scoped, tag = 'input window, operand 0']
    #allocation4 [shape = 's32[2]{0}', space=sflag, size = 0x8, scoped, tag = 'scoped memory for tpu_custom_call.1']
    #allocation5 [shape = 's32[2]{0}', space=sflag, size = 0x8, scoped, tag = 'scoped memory for tpu_custom_call.1']
    #allocation6 [shape = 'u8[8192]{0}', space=vmem, size = 0x2000, scoped, tag = 'input window, operand 1']
    #allocation7 [shape = 's32[2]{0}', space=sflag, size = 0x8, scoped, tag = 'scoped memory for tpu_custom_call.1']
    #allocation8 [shape = 'u8[8192]{0}', space=vmem, size = 0x2000, scoped, tag = 'input window, operand 2']
    #allocation9 [shape = 'u8[1024]{0}', space=vmem, size = 0x400, scoped, tag = 'input window, operand 3']
    #allocation10 [shape = 's32[2]{0}', space=sflag, size = 0x8, scoped, tag = 'scoped memory for tpu_custom_call.1']
    #allocation11 [shape = 'u8[16384]{0}', space=vmem, size = 0x4000, scoped, tag = 'input window, operand 4, single buffered']
    #allocation12 [shape = 'u8[512]{0}', space=vmem, size = 0x400, scoped, tag = 'input window, operand 5, single buffered']
    #allocation13 [shape = 's32[1]{0}', space=sflag, size = 0x4, scoped, tag = 'scoped memory for tpu_custom_call.1']
    #allocation14 [shape = 'u8[16384]{0}', space=vmem, size = 0x4000, scoped, tag = 'input window, operand 6, single buffered']
    #allocation15 [shape = 'u8[512]{0}', space=vmem, size = 0x400, scoped, tag = 'input window, operand 7, single buffered']
    #allocation16 [shape = 's32[1]{0}', space=sflag, size = 0x4, scoped, tag = 'scoped memory for tpu_custom_call.1']
    #allocation17 [shape = 'u8[16384]{0}', space=vmem, size = 0x4000, scoped, tag = 'input window, operand 8, single buffered']
    #allocation18 [shape = 'u8[512]{0}', space=vmem, size = 0x400, scoped, tag = 'input window, operand 9, single buffered']
    #allocation19 [shape = 's32[1]{0}', space=sflag, size = 0x4, scoped, tag = 'scoped memory for tpu_custom_call.1']
    #allocation20 [shape = 'u8[16384]{0}', space=vmem, size = 0x4000, scoped, tag = 'input window, operand 10, single buffered']
    #allocation21 [shape = 'u8[512]{0}', space=vmem, size = 0x400, scoped, tag = 'input window, operand 11, single buffered']
    #allocation22 [shape = 's32[1]{0}', space=sflag, size = 0x4, scoped, tag = 'scoped memory for tpu_custom_call.1']
    #allocation23 [shape = 'u8[8192]{0}', space=vmem, size = 0x2000, scoped, tag = 'output window, operand 0']
    %17 = vsyncpa [#allocation4], 0
    %s18 = scalar_lea.sflag [#allocation4], 1
    %19 = vsyncpa %s18, 0
    %20 = vsyncpa [#allocation7], 0
    %s21 = scalar_lea.sflag [#allocation7], 1
    %22 = vsyncpa %s21, 0
    %23 = vsyncpa [#allocation10], 0
    %s24 = scalar_lea.sflag [#allocation10], 1
    %25 = vsyncpa %s24, 0
    %26 = vsyncpa [#allocation13], 0
    %27 = vsyncpa [#allocation16], 0
    %28 = vsyncpa [#allocation19], 0
    %29 = vsyncpa [#allocation22], 0
    %30 = vsyncpa [#allocation5], 0
    %s31 = scalar_lea.sflag [#allocation5], 1
    %32 = vsyncpa %s31, 0
    loop: start=0, step=1, limit=4
    $region2: #{tpu_custom_call.1} parent=1 // loop_pre_header
      _
    $region3: #{tpu_custom_call.1} parent=1 // loop_header
      %s34 = sphi 0, %s38
      %p35 = scmp.ge.s32.totalorder %s34, 4
      %s41 = sphi 0, %s53
      %s42 = sphi 0, %s49
      %s43 = sphi 0, %s41
      %s44 = sphi 0, %s42
      %s45 = sphi 0, %s43
      %s46 = sphi 0, %s44
      %s56 = sphi 0, %s58
      %s59 = sphi 0, %s56
      %s60 = sphi 0, %s59
      %s76 = sphi 0, %s60
      %s82 = sphi 0, %s84
      %s85 = sphi 0, %s82
      %s86 = sphi 0, %s85
      %s102 = sphi 0, %s86
      %s110 = sphi 0, %s112
      %s113 = sphi 0, %s110
      %s114 = sphi 0, %s113
      %s130 = sphi 0, %s114
      %s136 = sphi 0, %s138
      %s139 = sphi 0, %s136
      %s140 = sphi 0, %s139
      %s156 = sphi 0, %s140
      %s160 = sphi 0, %s160
      %s162 = sphi 0, %s160
      %s163 = sphi 0, %s162
      %s177 = sphi 0, %s163
      %s181 = sphi 0, %s181
      %s183 = sphi 0, %s181
      %s184 = sphi 0, %s183
      %s198 = sphi 0, %s184
      %s202 = sphi 0, %s202
      %s204 = sphi 0, %s202
      %s205 = sphi 0, %s204
      %s219 = sphi 0, %s205
      %s223 = sphi 0, %s223
      %s225 = sphi 0, %s223
      %s226 = sphi 0, %s225
      %s240 = sphi 0, %s226
      %s244 = sphi 0, %s244
      %s246 = sphi 0, %s244
      %s247 = sphi 0, %s246
      %s261 = sphi 0, %s247
      %s265 = sphi 0, %s265
      %s267 = sphi 0, %s265
      %s268 = sphi 0, %s267
      %s282 = sphi 0, %s268
      %s286 = sphi 0, %s286
      %s288 = sphi 0, %s286
      %s289 = sphi 0, %s288
      %s303 = sphi 0, %s289
      %s307 = sphi 0, %s307
      %s309 = sphi 0, %s307
      %s310 = sphi 0, %s309
      %s324 = sphi 0, %s310
      %s332 = sphi 0, %s334
      %s335 = sphi 0, %s332
      %s336 = sphi 0, %s335
      %s352 = sphi 0, %s336
    $region4: #{tpu_custom_call.1} parent=1 // loop_header_branch
      %37 = sbr.rel (%p35) target = $region8
    $region5: #{tpu_custom_call.1} parent=1 // loop_body
      %s39 = ssub.s32 %s34, 1
      %s40 = ssub.s32 %s34, 2
      %s47 = sadd.s32 1, %s42
      %p48 = scmp.ge.s32.totalorder %s47, 1
      %s49 = scalar_select %p48, 0, %s47
      %s50 = sadd.s32 1, %s41
      %s51 = scalar_select %p48, %s50, %s41
      %p52 = scmp.ge.s32.totalorder %s51, 2
      %s53 = scalar_select %p52, 0, %s51
      %s54 = ssub.s32 %s41, %s53
      %p55 = scmp.eq.s32.totalorder %s54, 0
      %s57 = sadd.s32 %s56, 1
      %s58 = scalar_select %p55, %s56, %s57
      %p61 = pneg %p55
      %p62 = scmp.eq.s32.totalorder %s34, 1
      %p63 = por %p61, %p62
      %p64 = scmp.ne.s32.totalorder %s56, %s59
      %p65 = scmp.eq.s32.totalorder %s34, 0
      %p66 = por %p64, %p65
      %p67 = scmp.ne.s32.totalorder %s56, %s59
      %p68 = scmp.eq.s32.totalorder %s39, 1
      %p69 = por %p67, %p68
      %p70 = scmp.ne.s32.totalorder %s59, %s60
      %p71 = scmp.eq.s32.totalorder %s39, 0
      %p72 = por %p70, %p71
      %p73 = scmp.ne.s32.totalorder %s59, %s60
      %p74 = scmp.eq.s32.totalorder %s40, 1
      %p75 = por %p73, %p74
      %p77 = scmp.ne.s32.totalorder %s60, %s76
      %p78 = scmp.eq.s32.totalorder %s40, 0
      %p79 = por %p77, %p78
      %s80 = ssub.s32 %s41, %s53
      %p81 = scmp.eq.s32.totalorder %s80, 0
      %s83 = sadd.s32 %s82, 1
      %s84 = scalar_select %p81, %s82, %s83
      %p87 = pneg %p81
      %p88 = scmp.eq.s32.totalorder %s34, 1
      %p89 = por %p87, %p88
      %p90 = scmp.ne.s32.totalorder %s82, %s85
      %p91 = scmp.eq.s32.totalorder %s34, 0
      %p92 = por %p90, %p91
      %p93 = scmp.ne.s32.totalorder %s82, %s85
      %p94 = scmp.eq.s32.totalorder %s39, 1
      %p95 = por %p93, %p94
      %p96 = scmp.ne.s32.totalorder %s85, %s86
      %p97 = scmp.eq.s32.totalorder %s39, 0
      %p98 = por %p96, %p97
      %p99 = scmp.ne.s32.totalorder %s85, %s86
      %p100 = scmp.eq.s32.totalorder %s40, 1
      %p101 = por %p99, %p100
      %p103 = scmp.ne.s32.totalorder %s86, %s102
      %p104 = scmp.eq.s32.totalorder %s40, 0
      %p105 = por %p103, %p104
      %s106 = ssub.s32 %s41, %s53
      %s107 = ssub.s32 %s42, %s49
      %s108 = sor.u32 %s106, %s107
      %p109 = scmp.eq.s32.totalorder %s108, 0
      %s111 = sadd.s32 %s110, 1
      %s112 = scalar_select %p109, %s110, %s111
      %p115 = pneg %p109
      %p116 = scmp.eq.s32.totalorder %s34, 1
      %p117 = por %p115, %p116
      %p118 = scmp.ne.s32.totalorder %s110, %s113
      %p119 = scmp.eq.s32.totalorder %s34, 0
      %p120 = por %p118, %p119
      %p121 = scmp.ne.s32.totalorder %s110, %s113
      %p122 = scmp.eq.s32.totalorder %s39, 1
      %p123 = por %p121, %p122
      %p124 = scmp.ne.s32.totalorder %s113, %s114
      %p125 = scmp.eq.s32.totalorder %s39, 0
      %p126 = por %p124, %p125
      %p127 = scmp.ne.s32.totalorder %s113, %s114
      %p128 = scmp.eq.s32.totalorder %s40, 1
      %p129 = por %p127, %p128
      %p131 = scmp.ne.s32.totalorder %s114, %s130
      %p132 = scmp.eq.s32.totalorder %s40, 0
      %p133 = por %p131, %p132
      %s134 = ssub.s32 %s41, %s53
      %p135 = scmp.eq.s32.totalorder %s134, 0
      %s137 = sadd.s32 %s136, 1
      %s138 = scalar_select %p135, %s136, %s137
      %p141 = pneg %p135
      %p142 = scmp.eq.s32.totalorder %s34, 1
      %p143 = por %p141, %p142
      %p144 = scmp.ne.s32.totalorder %s136, %s139
      %p145 = scmp.eq.s32.totalorder %s34, 0
      %p146 = por %p144, %p145
      %p147 = scmp.ne.s32.totalorder %s136, %s139
      %p148 = scmp.eq.s32.totalorder %s39, 1
      %p149 = por %p147, %p148
      %p150 = scmp.ne.s32.totalorder %s139, %s140
      %p151 = scmp.eq.s32.totalorder %s39, 0
      %p152 = por %p150, %p151
      %p153 = scmp.ne.s32.totalorder %s139, %s140
      %p154 = scmp.eq.s32.totalorder %s40, 1
      %p155 = por %p153, %p154
      %p157 = scmp.ne.s32.totalorder %s140, %s156
      %p158 = scmp.eq.s32.totalorder %s40, 0
      %p159 = por %p157, %p158
      %s161 = sadd.s32 %s160, 1
      %p164 = scmp.eq.s32.totalorder %s34, 1
      %p165 = scmp.ne.s32.totalorder %s160, %s162
      %p166 = scmp.eq.s32.totalorder %s34, 0
      %p167 = por %p165, %p166
      %p168 = scmp.ne.s32.totalorder %s160, %s162
      %p169 = scmp.eq.s32.totalorder %s39, 1
      %p170 = por %p168, %p169
      %p171 = scmp.ne.s32.totalorder %s162, %s163
      %p172 = scmp.eq.s32.totalorder %s39, 0
      %p173 = por %p171, %p172
      %p174 = scmp.ne.s32.totalorder %s162, %s163
      %p175 = scmp.eq.s32.totalorder %s40, 1
      %p176 = por %p174, %p175
      %p178 = scmp.ne.s32.totalorder %s163, %s177
      %p179 = scmp.eq.s32.totalorder %s40, 0
      %p180 = por %p178, %p179
      %s182 = sadd.s32 %s181, 1
      %p185 = scmp.eq.s32.totalorder %s34, 1
      %p186 = scmp.ne.s32.totalorder %s181, %s183
      %p187 = scmp.eq.s32.totalorder %s34, 0
      %p188 = por %p186, %p187
      %p189 = scmp.ne.s32.totalorder %s181, %s183
      %p190 = scmp.eq.s32.totalorder %s39, 1
      %p191 = por %p189, %p190
      %p192 = scmp.ne.s32.totalorder %s183, %s184
      %p193 = scmp.eq.s32.totalorder %s39, 0
      %p194 = por %p192, %p193
      %p195 = scmp.ne.s32.totalorder %s183, %s184
      %p196 = scmp.eq.s32.totalorder %s40, 1
      %p197 = por %p195, %p196
      %p199 = scmp.ne.s32.totalorder %s184, %s198
      %p200 = scmp.eq.s32.totalorder %s40, 0
      %p201 = por %p199, %p200
      %s203 = sadd.s32 %s202, 1
      %p206 = scmp.eq.s32.totalorder %s34, 1
      %p207 = scmp.ne.s32.totalorder %s202, %s204
      %p208 = scmp.eq.s32.totalorder %s34, 0
      %p209 = por %p207, %p208
      %p210 = scmp.ne.s32.totalorder %s202, %s204
      %p211 = scmp.eq.s32.totalorder %s39, 1
      %p212 = por %p210, %p211
      %p213 = scmp.ne.s32.totalorder %s204, %s205
      %p214 = scmp.eq.s32.totalorder %s39, 0
      %p215 = por %p213, %p214
      %p216 = scmp.ne.s32.totalorder %s204, %s205
      %p217 = scmp.eq.s32.totalorder %s40, 1
      %p218 = por %p216, %p217
      %p220 = scmp.ne.s32.totalorder %s205, %s219
      %p221 = scmp.eq.s32.totalorder %s40, 0
      %p222 = por %p220, %p221
      %s224 = sadd.s32 %s223, 1
      %p227 = scmp.eq.s32.totalorder %s34, 1
      %p228 = scmp.ne.s32.totalorder %s223, %s225
      %p229 = scmp.eq.s32.totalorder %s34, 0
      %p230 = por %p228, %p229
      %p231 = scmp.ne.s32.totalorder %s223, %s225
      %p232 = scmp.eq.s32.totalorder %s39, 1
      %p233 = por %p231, %p232
      %p234 = scmp.ne.s32.totalorder %s225, %s226
      %p235 = scmp.eq.s32.totalorder %s39, 0
      %p236 = por %p234, %p235
      %p237 = scmp.ne.s32.totalorder %s225, %s226
      %p238 = scmp.eq.s32.totalorder %s40, 1
      %p239 = por %p237, %p238
      %p241 = scmp.ne.s32.totalorder %s226, %s240
      %p242 = scmp.eq.s32.totalorder %s40, 0
      %p243 = por %p241, %p242
      %s245 = sadd.s32 %s244, 1
      %p248 = scmp.eq.s32.totalorder %s34, 1
      %p249 = scmp.ne.s32.totalorder %s244, %s246
      %p250 = scmp.eq.s32.totalorder %s34, 0
      %p251 = por %p249, %p250
      %p252 = scmp.ne.s32.totalorder %s244, %s246
      %p253 = scmp.eq.s32.totalorder %s39, 1
      %p254 = por %p252, %p253
      %p255 = scmp.ne.s32.totalorder %s246, %s247
      %p256 = scmp.eq.s32.totalorder %s39, 0
      %p257 = por %p255, %p256
      %p258 = scmp.ne.s32.totalorder %s246, %s247
      %p259 = scmp.eq.s32.totalorder %s40, 1
      %p260 = por %p258, %p259
      %p262 = scmp.ne.s32.totalorder %s247, %s261
      %p263 = scmp.eq.s32.totalorder %s40, 0
      %p264 = por %p262, %p263
      %s266 = sadd.s32 %s265, 1
      %p269 = scmp.eq.s32.totalorder %s34, 1
      %p270 = scmp.ne.s32.totalorder %s265, %s267
      %p271 = scmp.eq.s32.totalorder %s34, 0
      %p272 = por %p270, %p271
      %p273 = scmp.ne.s32.totalorder %s265, %s267
      %p274 = scmp.eq.s32.totalorder %s39, 1
      %p275 = por %p273, %p274
      %p276 = scmp.ne.s32.totalorder %s267, %s268
      %p277 = scmp.eq.s32.totalorder %s39, 0
      %p278 = por %p276, %p277
      %p279 = scmp.ne.s32.totalorder %s267, %s268
      %p280 = scmp.eq.s32.totalorder %s40, 1
      %p281 = por %p279, %p280
      %p283 = scmp.ne.s32.totalorder %s268, %s282
      %p284 = scmp.eq.s32.totalorder %s40, 0
      %p285 = por %p283, %p284
      %s287 = sadd.s32 %s286, 1
      %p290 = scmp.eq.s32.totalorder %s34, 1
      %p291 = scmp.ne.s32.totalorder %s286, %s288
      %p292 = scmp.eq.s32.totalorder %s34, 0
      %p293 = por %p291, %p292
      %p294 = scmp.ne.s32.totalorder %s286, %s288
      %p295 = scmp.eq.s32.totalorder %s39, 1
      %p296 = por %p294, %p295
      %p297 = scmp.ne.s32.totalorder %s288, %s289
      %p298 = scmp.eq.s32.totalorder %s39, 0
      %p299 = por %p297, %p298
      %p300 = scmp.ne.s32.totalorder %s288, %s289
      %p301 = scmp.eq.s32.totalorder %s40, 1
      %p302 = por %p300, %p301
      %p304 = scmp.ne.s32.totalorder %s289, %s303
      %p305 = scmp.eq.s32.totalorder %s40, 0
      %p306 = por %p304, %p305
      %s308 = sadd.s32 %s307, 1
      %p311 = scmp.eq.s32.totalorder %s34, 1
      %p312 = scmp.ne.s32.totalorder %s307, %s309
      %p313 = scmp.eq.s32.totalorder %s34, 0
      %p314 = por %p312, %p313
      %p315 = scmp.ne.s32.totalorder %s307, %s309
      %p316 = scmp.eq.s32.totalorder %s39, 1
      %p317 = por %p315, %p316
      %p318 = scmp.ne.s32.totalorder %s309, %s310
      %p319 = scmp.eq.s32.totalorder %s39, 0
      %p320 = por %p318, %p319
      %p321 = scmp.ne.s32.totalorder %s309, %s310
      %p322 = scmp.eq.s32.totalorder %s40, 1
      %p323 = por %p321, %p322
      %p325 = scmp.ne.s32.totalorder %s310, %s324
      %p326 = scmp.eq.s32.totalorder %s40, 0
      %p327 = por %p325, %p326
      %s328 = ssub.s32 %s41, %s53
      %s329 = ssub.s32 %s42, %s49
      %s330 = sor.u32 %s328, %s329
      %p331 = scmp.eq.s32.totalorder %s330, 0
      %s333 = sadd.s32 %s332, 1
      %s334 = scalar_select %p331, %s332, %s333
      %p337 = pneg %p331
      %p338 = scmp.eq.s32.totalorder %s34, 1
      %p339 = por %p337, %p338
      %p340 = scmp.ne.s32.totalorder %s332, %s335
      %p341 = scmp.eq.s32.totalorder %s34, 0
      %p342 = por %p340, %p341
      %p343 = scmp.ne.s32.totalorder %s332, %s335
      %p344 = scmp.eq.s32.totalorder %s39, 1
      %p345 = por %p343, %p344
      %p346 = scmp.ne.s32.totalorder %s335, %s336
      %p347 = scmp.eq.s32.totalorder %s39, 0
      %p348 = por %p346, %p347
      %p349 = scmp.ne.s32.totalorder %s335, %s336
      %p350 = scmp.eq.s32.totalorder %s40, 1
      %p351 = por %p349, %p350
      %p353 = scmp.ne.s32.totalorder %s336, %s352
      %p354 = scmp.eq.s32.totalorder %s40, 0
      %p355 = por %p353, %p354
      %p356 = scmp.le.s32.totalorder 1, %s34
      %p357 = scmp.lt.s32.totalorder %s34, 3
      %p358 = pnand %p356, %p357
      %p359 = pneg %p358
      // Predicated region
      $region9: #{tpu_custom_call.1} parent=5 // pred_check
        _
      $region10: #{tpu_custom_call.1} parent=5 // pred_check_branch
        %361 = sbr.rel (%p358) target = $region12
      $region11: #{tpu_custom_call.1} parent=5 // pred_region
        %s362 = ssub.s32 %s34, 1
        // Predicated region
        $region13: #{tpu_custom_call.1} parent=11 // pred_check
          %p363 = pneg %p173
        $region14: #{tpu_custom_call.1} parent=11 // pred_check_branch
          %365 = sbr.rel (%p363) target = $region16
        $region15: #{tpu_custom_call.1} parent=11 // pred_region
          %s367 = ssub.s32 512, 512
          %368 = vsyncadd [#allocation10], %s367
          %s369 = sshll.u32 [#allocation11], 4
          %s370 = int_to_ptr.vmem [resolvable:$true] %s369
          %375 = dma.hbm_to_vmem [thread:$0]  %s4, 512, %s370, [#allocation10], 128, 128, 8
        $region16: #{tpu_custom_call.1} parent=11 // pred_fallthru
          _
        // Predicated region
        $region17: #{tpu_custom_call.1} parent=11 // pred_check
          %p376 = pneg %p194
        $region18: #{tpu_custom_call.1} parent=11 // pred_check_branch
          %378 = sbr.rel (%p376) target = $region20
        $region19: #{tpu_custom_call.1} parent=11 // pred_region
          %s380 = ssub.s32 16, 16
          %381 = vsyncadd [#allocation13], %s380
          %s383 = sshll.u32 [#allocation12], 4
          %s384 = int_to_ptr.vmem [resolvable:$true] %s383
          %386 = dma.hbm_to_vmem [thread:$0]  %s5, 16, %s384, [#allocation13]
        $region20: #{tpu_custom_call.1} parent=11 // pred_fallthru
          _
        // Predicated region
        $region21: #{tpu_custom_call.1} parent=11 // pred_check
          %p387 = pneg %p215
        $region22: #{tpu_custom_call.1} parent=11 // pred_check_branch
          %389 = sbr.rel (%p387) target = $region24
        $region23: #{tpu_custom_call.1} parent=11 // pred_region
          %s391 = ssub.s32 512, 512
          %392 = vsyncadd [#allocation13], %s391
          %s393 = sshll.u32 [#allocation14], 4
          %s394 = int_to_ptr.vmem [resolvable:$true] %s393
          %399 = dma.hbm_to_vmem [thread:$0]  %s6, 512, %s394, [#allocation13], 128, 128, 8
        $region24: #{tpu_custom_call.1} parent=11 // pred_fallthru
          _
        // Predicated region
        $region25: #{tpu_custom_call.1} parent=11 // pred_check
          %p400 = pneg %p236
        $region26: #{tpu_custom_call.1} parent=11 // pred_check_branch
          %402 = sbr.rel (%p400) target = $region28
        $region27: #{tpu_custom_call.1} parent=11 // pred_region
          %s404 = ssub.s32 16, 16
          %405 = vsyncadd [#allocation16], %s404
          %s407 = sshll.u32 [#allocation15], 4
          %s408 = int_to_ptr.vmem [resolvable:$true] %s407
          %410 = dma.hbm_to_vmem [thread:$0]  %s7, 16, %s408, [#allocation16]
        $region28: #{tpu_custom_call.1} parent=11 // pred_fallthru
          _
        // Predicated region
        $region29: #{tpu_custom_call.1} parent=11 // pred_check
          %p411 = pneg %p257
        $region30: #{tpu_custom_call.1} parent=11 // pred_check_branch
          %413 = sbr.rel (%p411) target = $region32
        $region31: #{tpu_custom_call.1} parent=11 // pred_region
          %s415 = ssub.s32 512, 512
          %416 = vsyncadd [#allocation16], %s415
          %s417 = sshll.u32 [#allocation17], 4
          %s418 = int_to_ptr.vmem [resolvable:$true] %s417
          %423 = dma.hbm_to_vmem [thread:$0]  %s8, 512, %s418, [#allocation16], 128, 128, 8
        $region32: #{tpu_custom_call.1} parent=11 // pred_fallthru
          _
        // Predicated region
        $region33: #{tpu_custom_call.1} parent=11 // pred_check
          %p424 = pneg %p278
        $region34: #{tpu_custom_call.1} parent=11 // pred_check_branch
          %426 = sbr.rel (%p424) target = $region36
        $region35: #{tpu_custom_call.1} parent=11 // pred_region
          %s428 = ssub.s32 16, 16
          %429 = vsyncadd [#allocation19], %s428
          %s431 = sshll.u32 [#allocation18], 4
          %s432 = int_to_ptr.vmem [resolvable:$true] %s431
          %434 = dma.hbm_to_vmem [thread:$0]  %s9, 16, %s432, [#allocation19]
        $region36: #{tpu_custom_call.1} parent=11 // pred_fallthru
          _
        // Predicated region
        $region37: #{tpu_custom_call.1} parent=11 // pred_check
          %p435 = pneg %p299
        $region38: #{tpu_custom_call.1} parent=11 // pred_check_branch
          %437 = sbr.rel (%p435) target = $region40
        $region39: #{tpu_custom_call.1} parent=11 // pred_region
          %s439 = ssub.s32 512, 512
          %440 = vsyncadd [#allocation19], %s439
          %s441 = sshll.u32 [#allocation20], 4
          %s442 = int_to_ptr.vmem [resolvable:$true] %s441
          %447 = dma.hbm_to_vmem [thread:$0]  %s10, 512, %s442, [#allocation19], 128, 128, 8
        $region40: #{tpu_custom_call.1} parent=11 // pred_fallthru
          _
        // Predicated region
        $region41: #{tpu_custom_call.1} parent=11 // pred_check
          %p448 = pneg %p320
        $region42: #{tpu_custom_call.1} parent=11 // pred_check_branch
          %450 = sbr.rel (%p448) target = $region44
        $region43: #{tpu_custom_call.1} parent=11 // pred_region
          %s452 = ssub.s32 16, 16
          %453 = vsyncadd [#allocation22], %s452
          %s455 = sshll.u32 [#allocation21], 4
          %s456 = int_to_ptr.vmem [resolvable:$true] %s455
          %458 = dma.hbm_to_vmem [thread:$0]  %s11, 16, %s456, [#allocation22]
        $region44: #{tpu_custom_call.1} parent=11 // pred_fallthru
          _
      $region12: #{tpu_custom_call.1} parent=5 // pred_fallthru
        _
      %p459 = scmp.lt.s32.totalorder %s34, 2
      // Predicated region
      $region45: #{tpu_custom_call.1} parent=5 // pred_check
        %p460 = pneg %p459
      $region46: #{tpu_custom_call.1} parent=5 // pred_check_branch
        %462 = sbr.rel (%p460) target = $region48
      $region47: #{tpu_custom_call.1} parent=5 // pred_region
        // Predicated region
        $region49: #{tpu_custom_call.1} parent=47 // pred_check
          %p463 = pneg %p66
        $region50: #{tpu_custom_call.1} parent=47 // pred_check_branch
          %465 = sbr.rel (%p463) target = $region52
        $region51: #{tpu_custom_call.1} parent=47 // pred_region
          %s466 = sand.u32 %s56, 1
          %s467 = scalar_lea.sflag [#allocation4], %s466
          %s468 = sand.u32 %s56, 1
          %s469 = smul.addr %s468, 8
          %s470 = scalar_lea.vmem [#allocation3], %s469
          %s472 = ssub.s32 128, 128
          %473 = vsyncadd %s467, %s472
          %s474 = smul.addr %s41, 128
          %s475 = scalar_lea.hbm %s0, %s474
          %s477 = sshll.u32 %s470, 4
          %s478 = int_to_ptr.vmem [resolvable:$true] %s477
          %480 = dma.hbm_to_vmem [thread:$0]  %s475, 128, %s478, %s467
        $region52: #{tpu_custom_call.1} parent=47 // pred_fallthru
          _
        // Predicated region
        $region53: #{tpu_custom_call.1} parent=47 // pred_check
          %p481 = pneg %p92
        $region54: #{tpu_custom_call.1} parent=47 // pred_check_branch
          %483 = sbr.rel (%p481) target = $region56
        $region55: #{tpu_custom_call.1} parent=47 // pred_region
          %s484 = sand.u32 %s34, 1
          %s485 = scalar_lea.sflag [#allocation7], %s484
          %s486 = sand.u32 %s82, 1
          %s487 = smul.addr %s486, 8
          %s488 = scalar_lea.vmem [#allocation6], %s487
          %s490 = ssub.s32 128, 128
          %491 = vsyncadd %s485, %s490
          %s492 = smul.addr %s41, 128
          %s493 = scalar_lea.hbm %s1, %s492
          %s495 = sshll.u32 %s488, 4
          %s496 = int_to_ptr.vmem [resolvable:$true] %s495
          %498 = dma.hbm_to_vmem [thread:$0]  %s493, 128, %s496, %s485
        $region56: #{tpu_custom_call.1} parent=47 // pred_fallthru
          _
        // Predicated region
        $region57: #{tpu_custom_call.1} parent=47 // pred_check
          %p499 = pneg %p120
        $region58: #{tpu_custom_call.1} parent=47 // pred_check_branch
          %501 = sbr.rel (%p499) target = $region60
        $region59: #{tpu_custom_call.1} parent=47 // pred_region
          %s502 = sand.u32 %s34, 1
          %s503 = scalar_lea.sflag [#allocation7], %s502
          %s504 = sand.u32 %s110, 1
          %s505 = smul.addr %s504, 8
          %s506 = scalar_lea.vmem [#allocation8], %s505
          %s508 = ssub.s32 128, 128
          %509 = vsyncadd %s503, %s508
          %s510 = sadd.s32 %s42, %s41
          %s511 = smul.addr %s510, 128
          %s512 = scalar_lea.hbm %s2, %s511
          %s514 = sshll.u32 %s506, 4
          %s515 = int_to_ptr.vmem [resolvable:$true] %s514
          %517 = dma.hbm_to_vmem [thread:$0]  %s512, 128, %s515, %s503
        $region60: #{tpu_custom_call.1} parent=47 // pred_fallthru
          _
        // Predicated region
        $region61: #{tpu_custom_call.1} parent=47 // pred_check
          %p518 = pneg %p146
        $region62: #{tpu_custom_call.1} parent=47 // pred_check_branch
          %520 = sbr.rel (%p518) target = $region64
        $region63: #{tpu_custom_call.1} parent=47 // pred_region
          %s521 = sand.u32 %s34, 1
          %s522 = scalar_lea.sflag [#allocation10], %s521
          %s523 = sand.u32 %s136, 1
          %s524 = scalar_lea.vmem [#allocation9], %s523
          %s526 = ssub.s32 16, 16
          %527 = vsyncadd %s522, %s526
          %s528 = smul.addr %s41, 16
          %s529 = scalar_lea.hbm %s3, %s528
          %s531 = sshll.u32 %s524, 4
          %s532 = int_to_ptr.vmem [resolvable:$true] %s531
          %534 = dma.hbm_to_vmem [thread:$0]  %s529, 16, %s532, %s522
        $region64: #{tpu_custom_call.1} parent=47 // pred_fallthru
          _
      $region48: #{tpu_custom_call.1} parent=5 // pred_fallthru
        _
      %p535 = scmp.le.s32.totalorder 1, %s34
      %p536 = scmp.lt.s32.totalorder %s34, 3
      %p537 = pnand %p535, %p536
      %p538 = pneg %p537
      // Predicated region
      $region65: #{tpu_custom_call.1} parent=5 // pred_check
        _
      $region66: #{tpu_custom_call.1} parent=5 // pred_check_branch
        %540 = sbr.rel (%p537) target = $region68
      $region67: #{tpu_custom_call.1} parent=5 // pred_region
        %s541 = ssub.s32 %s34, 1
        %s542 = sand.u32 %s59, 1
        %s543 = scalar_lea.sflag [#allocation4], %s542
        %s544 = sand.u32 %s59, 1
        %s545 = smul.addr %s544, 8
        %s546 = scalar_lea.vmem [#allocation3], %s545
        // Predicated region
        $region69: #{tpu_custom_call.1} parent=67 // pred_check
          %p547 = pneg %p72
        $region70: #{tpu_custom_call.1} parent=67 // pred_check_branch
          %549 = sbr.rel (%p547) target = $region72
        $region71: #{tpu_custom_call.1} parent=67 // pred_region
          %550 = dma.done %s543, 128
        $region72: #{tpu_custom_call.1} parent=67 // pred_fallthru
          _
        %s551 = sand.u32 %s39, 1
        %s552 = scalar_lea.sflag [#allocation7], %s551
        %s553 = sand.u32 %s85, 1
        %s554 = smul.addr %s553, 8
        %s555 = scalar_lea.vmem [#allocation6], %s554
        // Predicated region
        $region73: #{tpu_custom_call.1} parent=67 // pred_check
          %p556 = pneg %p98
        $region74: #{tpu_custom_call.1} parent=67 // pred_check_branch
          %558 = sbr.rel (%p556) target = $region76
        $region75: #{tpu_custom_call.1} parent=67 // pred_region
          %559 = dma.done %s552, 128
        $region76: #{tpu_custom_call.1} parent=67 // pred_fallthru
          _
        %s560 = sand.u32 %s39, 1
        %s561 = scalar_lea.sflag [#allocation7], %s560
        %s562 = sand.u32 %s113, 1
        %s563 = smul.addr %s562, 8
        %s564 = scalar_lea.vmem [#allocation8], %s563
        // Predicated region
        $region77: #{tpu_custom_call.1} parent=67 // pred_check
          %p565 = pneg %p126
        $region78: #{tpu_custom_call.1} parent=67 // pred_check_branch
          %567 = sbr.rel (%p565) target = $region80
        $region79: #{tpu_custom_call.1} parent=67 // pred_region
          %568 = dma.done %s561, 128
        $region80: #{tpu_custom_call.1} parent=67 // pred_fallthru
          _
        %s569 = sand.u32 %s39, 1
        %s570 = scalar_lea.sflag [#allocation10], %s569
        %s571 = sand.u32 %s139, 1
        %s572 = scalar_lea.vmem [#allocation9], %s571
        // Predicated region
        $region81: #{tpu_custom_call.1} parent=67 // pred_check
          %p573 = pneg %p152
        $region82: #{tpu_custom_call.1} parent=67 // pred_check_branch
          %575 = sbr.rel (%p573) target = $region84
        $region83: #{tpu_custom_call.1} parent=67 // pred_region
          %576 = dma.done %s570, 16
        $region84: #{tpu_custom_call.1} parent=67 // pred_fallthru
          _
        // Predicated region
        $region85: #{tpu_custom_call.1} parent=67 // pred_check
          %p577 = pneg %p173
        $region86: #{tpu_custom_call.1} parent=67 // pred_check_branch
          %579 = sbr.rel (%p577) target = $region88
        $region87: #{tpu_custom_call.1} parent=67 // pred_region
          %580 = dma.done [#allocation10], 512
        $region88: #{tpu_custom_call.1} parent=67 // pred_fallthru
          _
        // Predicated region
        $region89: #{tpu_custom_call.1} parent=67 // pred_check
          %p581 = pneg %p194
        $region90: #{tpu_custom_call.1} parent=67 // pred_check_branch
          %583 = sbr.rel (%p581) target = $region92
        $region91: #{tpu_custom_call.1} parent=67 // pred_region
          %584 = dma.done [#allocation13], 16
        $region92: #{tpu_custom_call.1} parent=67 // pred_fallthru
          _
        // Predicated region
        $region93: #{tpu_custom_call.1} parent=67 // pred_check
          %p585 = pneg %p215
        $region94: #{tpu_custom_call.1} parent=67 // pred_check_branch
          %587 = sbr.rel (%p585) target = $region96
        $region95: #{tpu_custom_call.1} parent=67 // pred_region
          %588 = dma.done [#allocation13], 512
        $region96: #{tpu_custom_call.1} parent=67 // pred_fallthru
          _
        // Predicated region
        $region97: #{tpu_custom_call.1} parent=67 // pred_check
          %p589 = pneg %p236
        $region98: #{tpu_custom_call.1} parent=67 // pred_check_branch
          %591 = sbr.rel (%p589) target = $region100
        $region99: #{tpu_custom_call.1} parent=67 // pred_region
          %592 = dma.done [#allocation16], 16
        $region100: #{tpu_custom_call.1} parent=67 // pred_fallthru
          _
        // Predicated region
        $region101: #{tpu_custom_call.1} parent=67 // pred_check
          %p593 = pneg %p257
        $region102: #{tpu_custom_call.1} parent=67 // pred_check_branch
          %595 = sbr.rel (%p593) target = $region104
        $region103: #{tpu_custom_call.1} parent=67 // pred_region
          %596 = dma.done [#allocation16], 512
        $region104: #{tpu_custom_call.1} parent=67 // pred_fallthru
          _
        // Predicated region
        $region105: #{tpu_custom_call.1} parent=67 // pred_check
          %p597 = pneg %p278
        $region106: #{tpu_custom_call.1} parent=67 // pred_check_branch
          %599 = sbr.rel (%p597) target = $region108
        $region107: #{tpu_custom_call.1} parent=67 // pred_region
          %600 = dma.done [#allocation19], 16
        $region108: #{tpu_custom_call.1} parent=67 // pred_fallthru
          _
        // Predicated region
        $region109: #{tpu_custom_call.1} parent=67 // pred_check
          %p601 = pneg %p299
        $region110: #{tpu_custom_call.1} parent=67 // pred_check_branch
          %603 = sbr.rel (%p601) target = $region112
        $region111: #{tpu_custom_call.1} parent=67 // pred_region
          %604 = dma.done [#allocation19], 512
        $region112: #{tpu_custom_call.1} parent=67 // pred_fallthru
          _
        // Predicated region
        $region113: #{tpu_custom_call.1} parent=67 // pred_check
          %p605 = pneg %p320
        $region114: #{tpu_custom_call.1} parent=67 // pred_check_branch
          %607 = sbr.rel (%p605) target = $region116
        $region115: #{tpu_custom_call.1} parent=67 // pred_region
          %608 = dma.done [#allocation22], 16
        $region116: #{tpu_custom_call.1} parent=67 // pred_fallthru
          _
        %s609 = sand.u32 %s59, 1
        %s610 = scalar_lea.sflag [#allocation4], %s609
        %s611 = sand.u32 %s59, 1
        %s612 = smul.addr %s611, 8
        %s613 = scalar_lea.vmem [#allocation3], %s612
        %p614 = pneg %p72
        %p615 = pneg %p69
        %s616 = sand.u32 %s39, 1
        %s617 = scalar_lea.sflag [#allocation7], %s616
        %s618 = sand.u32 %s85, 1
        %s619 = smul.addr %s618, 8
        %s620 = scalar_lea.vmem [#allocation6], %s619
        %p621 = pneg %p98
        %p622 = pneg %p95
        %s623 = sand.u32 %s39, 1
        %s624 = scalar_lea.sflag [#allocation7], %s623
        %s625 = sand.u32 %s113, 1
        %s626 = smul.addr %s625, 8
        %s627 = scalar_lea.vmem [#allocation8], %s626
        %p628 = pneg %p126
        %p629 = pneg %p123
        %s630 = sand.u32 %s39, 1
        %s631 = scalar_lea.sflag [#allocation10], %s630
        %s632 = sand.u32 %s139, 1
        %s633 = scalar_lea.vmem [#allocation9], %s632
        %p634 = pneg %p152
        %p635 = pneg %p149
        %p636 = pneg %p173
        %p637 = pneg %p170
        %p638 = pneg %p194
        %p639 = pneg %p191
        %p640 = pneg %p215
        %p641 = pneg %p212
        %p642 = pneg %p236
        %p643 = pneg %p233
        %p644 = pneg %p257
        %p645 = pneg %p254
        %p646 = pneg %p278
        %p647 = pneg %p275
        %p648 = pneg %p299
        %p649 = pneg %p296
        %p650 = pneg %p320
        %p651 = pneg %p317
        %p652 = pneg %p348
        %p653 = pneg %p345
        %s654 = sand.u32 %s335, 1
        %s655 = scalar_lea.sflag [#allocation5], %s654
        %s656 = sand.u32 %s335, 1
        %s657 = smul.addr %s656, 8
        %s658 = scalar_lea.vmem [#allocation23], %s657
        %v659 = vld [vmem:[%s546] sm:$0xff]
        %v660 = vld [vmem:[#allocation11] sm:$0xff]
        %v661 = vld [vmem:[#allocation11 + $0x8] sm:$0xff]
        %v662 = vld [vmem:[#allocation11 + $0x10] sm:$0xff]
        %v663 = vld [vmem:[#allocation11 + $0x18] sm:$0xff]
        %v664 = vld [vmem:[#allocation12] sm:$0x1]
        %v666 = vlaneseq
        %v667 = vshrl.u32 %v666, 7
        %v668 = vsub.s32 0, %v667
        %v669 = vrot.slane %v664, %v668
        %vm671 = vcmask 261120
        %v673 = vsel %vm671, %v659, 0
        %675 = vmatprep.subr.mxu0 0.0
        %676 = vmatpush1.msra.mxu0 %v660
        %677 = vmatprep.subr.mxu0 0.0
        %678 = vmatpush1.msra.mxu0 %v661
        %679 = vmatprep.subr.mxu0 0.0
        %680 = vmatpush1.msra.mxu0 %v662
        %681 = vmatprep.subr.mxu0 0.0
        %682 = vmatpush1.msra.mxu0 %v663
        %683 = vmatprep.subr.mxu0 0.0
        %684 = vmatpush1.msra.mxu0 0.0
        %685 = vmatprep.subr.mxu0 0.0
        %686 = vmatpush1.msra.mxu0 0.0
        %687 = vmatprep.subr.mxu0 0.0
        %688 = vmatpush1.msra.mxu0 0.0
        %689 = vmatprep.subr.mxu0 0.0
        %690 = vmatpush1.msra.mxu0 0.0
        %691 = vmatprep.subr.mxu0 0.0
        %692 = vmatpush1.msra.mxu0 0.0
        %693 = vmatprep.subr.mxu0 0.0
        %694 = vmatpush1.msra.mxu0 0.0
        %695 = vmatprep.subr.mxu0 0.0
        %696 = vmatpush1.msra.mxu0 0.0
        %697 = vmatprep.subr.mxu0 0.0
        %698 = vmatpush1.msra.mxu0 0.0
        %699 = vmatprep.subr.mxu0 0.0
        %700 = vmatpush1.msra.mxu0 0.0
        %701 = vmatprep.subr.mxu0 0.0
        %702 = vmatpush1.msra.mxu0 0.0
        %703 = vmatprep.subr.mxu0 0.0
        %704 = vmatpush1.msra.mxu0 0.0
        %705 = vmatprep.subr.mxu0 0.0
        %706 = vmatpush1.msra.mxu0 0.0
        %707 = vmatprep.subr.mxu0 0.0
        %708 = vmatpush1.msra.mxu0 0.0
        %709 = vmatprep.subr.mxu0 0.0
        %710 = vmatpush1.msra.mxu0 0.0
        %711 = vmatprep.subr.mxu0 0.0
        %712 = vmatpush1.msra.mxu0 0.0
        %713 = vmatprep.subr.mxu0 0.0
        %714 = vmatpush1.msra.mxu0 0.0
        %715 = vmatprep.subr.mxu0 0.0
        %716 = vmatpush1.msra.mxu0 0.0
        %717 = vmatprep.subr.mxu0 0.0
        %718 = vmatpush1.msra.mxu0 0.0
        %719 = vmatprep.subr.mxu0 0.0
        %720 = vmatpush1.msra.mxu0 0.0
        %721 = vmatprep.subr.mxu0 0.0
        %722 = vmatpush1.msra.mxu0 0.0
        %723 = vmatprep.subr.mxu0 0.0
        %724 = vmatpush1.msra.mxu0 0.0
        %725 = vmatprep.subr.mxu0 0.0
        %726 = vmatpush1.msra.mxu0 0.0
        %727 = vmatprep.subr.mxu0 0.0
        %728 = vmatpush1.msra.mxu0 0.0
        %729 = vmatprep.subr.mxu0 0.0
        %730 = vmatpush1.msra.mxu0 0.0
        %731 = vmatprep.subr.mxu0 0.0
        %732 = vmatpush1.msra.mxu0 0.0
        %733 = vmatprep.subr.mxu0 0.0
        %734 = vmatpush1.msra.mxu0 0.0
        %735 = vmatprep.subr.mxu0 0.0
        %736 = vmatpush1.msra.mxu0 0.0
        %737 = vmatprep.subr.mxu0 0.0
        %738 = vmatpush1.msra.mxu0 0.0
        %739 = vmatprep.mubr.f32.mxu0 0.0
        %740 = vmatmul.mubr.f32.gmra.mrb[0].mxu0 %v673
        %v741 = vpop.f32.mrb[0].mxu0
        %v742 = vadd.f32 %v669, %v741
        %v743 = vpop.f32.mrb[0].mxu0
        %744 = vdwg.mxu0
        %v745 = vld [vmem:[%s555] sm:$0xff]
        %v746 = vld [vmem:[#allocation14] sm:$0xff]
        %v747 = vld [vmem:[#allocation14 + $0x8] sm:$0xff]
        %v748 = vld [vmem:[#allocation14 + $0x10] sm:$0xff]
        %v749 = vld [vmem:[#allocation14 + $0x18] sm:$0xff]
        %v750 = vld [vmem:[#allocation15] sm:$0x1]
        %v752 = vlaneseq
        %v753 = vshrl.u32 %v752, 7
        %v754 = vsub.s32 0, %v753
        %v755 = vrot.slane %v750, %v754
        %v758 = vsel %vm671, %v745, 0
        %760 = vmatprep.subr.mxu0 0.0
        %761 = vmatpush1.msra.mxu0 %v746
        %762 = vmatprep.subr.mxu0 0.0
        %763 = vmatpush1.msra.mxu0 %v747
        %764 = vmatprep.subr.mxu0 0.0
        %765 = vmatpush1.msra.mxu0 %v748
        %766 = vmatprep.subr.mxu0 0.0
        %767 = vmatpush1.msra.mxu0 %v749
        %768 = vmatprep.subr.mxu0 0.0
        %769 = vmatpush1.msra.mxu0 0.0
        %770 = vmatprep.subr.mxu0 0.0
        %771 = vmatpush1.msra.mxu0 0.0
        %772 = vmatprep.subr.mxu0 0.0
        %773 = vmatpush1.msra.mxu0 0.0
        %774 = vmatprep.subr.mxu0 0.0
        %775 = vmatpush1.msra.mxu0 0.0
        %776 = vmatprep.subr.mxu0 0.0
        %777 = vmatpush1.msra.mxu0 0.0
        %778 = vmatprep.subr.mxu0 0.0
        %779 = vmatpush1.msra.mxu0 0.0
        %780 = vmatprep.subr.mxu0 0.0
        %781 = vmatpush1.msra.mxu0 0.0
        %782 = vmatprep.subr.mxu0 0.0
        %783 = vmatpush1.msra.mxu0 0.0
        %784 = vmatprep.subr.mxu0 0.0
        %785 = vmatpush1.msra.mxu0 0.0
        %786 = vmatprep.subr.mxu0 0.0
        %787 = vmatpush1.msra.mxu0 0.0
        %788 = vmatprep.subr.mxu0 0.0
        %789 = vmatpush1.msra.mxu0 0.0
        %790 = vmatprep.subr.mxu0 0.0
        %791 = vmatpush1.msra.mxu0 0.0
        %792 = vmatprep.subr.mxu0 0.0
        %793 = vmatpush1.msra.mxu0 0.0
        %794 = vmatprep.subr.mxu0 0.0
        %795 = vmatpush1.msra.mxu0 0.0
        %796 = vmatprep.subr.mxu0 0.0
        %797 = vmatpush1.msra.mxu0 0.0
        %798 = vmatprep.subr.mxu0 0.0
        %799 = vmatpush1.msra.mxu0 0.0
        %800 = vmatprep.subr.mxu0 0.0
        %801 = vmatpush1.msra.mxu0 0.0
        %802 = vmatprep.subr.mxu0 0.0
        %803 = vmatpush1.msra.mxu0 0.0
        %804 = vmatprep.subr.mxu0 0.0
        %805 = vmatpush1.msra.mxu0 0.0
        %806 = vmatprep.subr.mxu0 0.0
        %807 = vmatpush1.msra.mxu0 0.0
        %808 = vmatprep.subr.mxu0 0.0
        %809 = vmatpush1.msra.mxu0 0.0
        %810 = vmatprep.subr.mxu0 0.0
        %811 = vmatpush1.msra.mxu0 0.0
        %812 = vmatprep.subr.mxu0 0.0
        %813 = vmatpush1.msra.mxu0 0.0
        %814 = vmatprep.subr.mxu0 0.0
        %815 = vmatpush1.msra.mxu0 0.0
        %816 = vmatprep.subr.mxu0 0.0
        %817 = vmatpush1.msra.mxu0 0.0
        %818 = vmatprep.subr.mxu0 0.0
        %819 = vmatpush1.msra.mxu0 0.0
        %820 = vmatprep.subr.mxu0 0.0
        %821 = vmatpush1.msra.mxu0 0.0
        %822 = vmatprep.subr.mxu0 0.0
        %823 = vmatpush1.msra.mxu0 0.0
        %824 = vmatprep.mubr.f32.mxu0 0.0
        %825 = vmatmul.mubr.f32.gmra.mrb[0].mxu0 %v758
        %v826 = vpop.f32.mrb[0].mxu0
        %v827 = vadd.f32 %v755, %v826
        %v828 = vpop.f32.mrb[0].mxu0
        %829 = vdwg.mxu0
        %v830 = vld [vmem:[%s564] sm:$0xff]
        %v831 = vld [vmem:[#allocation17] sm:$0xff]
        %v832 = vld [vmem:[#allocation17 + $0x8] sm:$0xff]
        %v833 = vld [vmem:[#allocation17 + $0x10] sm:$0xff]
        %v834 = vld [vmem:[#allocation17 + $0x18] sm:$0xff]
        %v835 = vld [vmem:[#allocation18] sm:$0x1]
        %v837 = vlaneseq
        %v838 = vshrl.u32 %v837, 7
        %v839 = vsub.s32 0, %v838
        %v840 = vrot.slane %v835, %v839
        %v843 = vsel %vm671, %v830, 0
        %845 = vmatprep.subr.mxu0 0.0
        %846 = vmatpush1.msra.mxu0 %v831
        %847 = vmatprep.subr.mxu0 0.0
        %848 = vmatpush1.msra.mxu0 %v832
        %849 = vmatprep.subr.mxu0 0.0
        %850 = vmatpush1.msra.mxu0 %v833
        %851 = vmatprep.subr.mxu0 0.0
        %852 = vmatpush1.msra.mxu0 %v834
        %853 = vmatprep.subr.mxu0 0.0
        %854 = vmatpush1.msra.mxu0 0.0
        %855 = vmatprep.subr.mxu0 0.0
        %856 = vmatpush1.msra.mxu0 0.0
        %857 = vmatprep.subr.mxu0 0.0
        %858 = vmatpush1.msra.mxu0 0.0
        %859 = vmatprep.subr.mxu0 0.0
        %860 = vmatpush1.msra.mxu0 0.0
        %861 = vmatprep.subr.mxu0 0.0
        %862 = vmatpush1.msra.mxu0 0.0
        %863 = vmatprep.subr.mxu0 0.0
        %864 = vmatpush1.msra.mxu0 0.0
        %865 = vmatprep.subr.mxu0 0.0
        %866 = vmatpush1.msra.mxu0 0.0
        %867 = vmatprep.subr.mxu0 0.0
        %868 = vmatpush1.msra.mxu0 0.0
        %869 = vmatprep.subr.mxu0 0.0
        %870 = vmatpush1.msra.mxu0 0.0
        %871 = vmatprep.subr.mxu0 0.0
        %872 = vmatpush1.msra.mxu0 0.0
        %873 = vmatprep.subr.mxu0 0.0
        %874 = vmatpush1.msra.mxu0 0.0
        %875 = vmatprep.subr.mxu0 0.0
        %876 = vmatpush1.msra.mxu0 0.0
        %877 = vmatprep.subr.mxu0 0.0
        %878 = vmatpush1.msra.mxu0 0.0
        %879 = vmatprep.subr.mxu0 0.0
        %880 = vmatpush1.msra.mxu0 0.0
        %881 = vmatprep.subr.mxu0 0.0
        %882 = vmatpush1.msra.mxu0 0.0
        %883 = vmatprep.subr.mxu0 0.0
        %884 = vmatpush1.msra.mxu0 0.0
        %885 = vmatprep.subr.mxu0 0.0
        %886 = vmatpush1.msra.mxu0 0.0
        %887 = vmatprep.subr.mxu0 0.0
        %888 = vmatpush1.msra.mxu0 0.0
        %889 = vmatprep.subr.mxu0 0.0
        %890 = vmatpush1.msra.mxu0 0.0
        %891 = vmatprep.subr.mxu0 0.0
        %892 = vmatpush1.msra.mxu0 0.0
        %893 = vmatprep.subr.mxu0 0.0
        %894 = vmatpush1.msra.mxu0 0.0
        %895 = vmatprep.subr.mxu0 0.0
        %896 = vmatpush1.msra.mxu0 0.0
        %897 = vmatprep.subr.mxu0 0.0
        %898 = vmatpush1.msra.mxu0 0.0
        %899 = vmatprep.subr.mxu0 0.0
        %900 = vmatpush1.msra.mxu0 0.0
        %901 = vmatprep.subr.mxu0 0.0
        %902 = vmatpush1.msra.mxu0 0.0
        %903 = vmatprep.subr.mxu0 0.0
        %904 = vmatpush1.msra.mxu0 0.0
        %905 = vmatprep.subr.mxu0 0.0
        %906 = vmatpush1.msra.mxu0 0.0
        %907 = vmatprep.subr.mxu0 0.0
        %908 = vmatpush1.msra.mxu0 0.0
        %909 = vmatprep.mubr.f32.mxu0 0.0
        %910 = vmatmul.mubr.f32.gmra.mrb[0].mxu0 %v843
        %v911 = vpop.f32.mrb[0].mxu0
        %v912 = vadd.f32 %v840, %v911
        %v913 = vpop.f32.mrb[0].mxu0
        %914 = vdwg.mxu0
        %v915 = vmul.f32 %v912, 0.35355338
        %v916 = vld [vmem:[%s572] sm:$0x1]
        %v918 = vlaneseq
        %v919 = vshrl.u32 %v918, 7
        %v920 = vsub.s32 0, %v919
        %v921 = vrot.slane %v916, %v920
        %vm923 = vcmask 64512
        %v925 = vsel %vm923, %v915, 0
        %v928 = vsel %vm923, %v742, 0
        %930 = vmatprep.subr.mxu0 0.0
        %931 = vmatpush1.xpose.msra.mxu0 %v928
        %932 = vmatprep.subr.mxu0 0.0
        %933 = vmatpush1.xpose.msra.mxu0 0.0
        %934 = vmatprep.subr.mxu0 0.0
        %935 = vmatpush1.xpose.msra.mxu0 0.0
        %936 = vmatprep.subr.mxu0 0.0
        %937 = vmatpush1.xpose.msra.mxu0 0.0
        %938 = vmatprep.subr.mxu0 0.0
        %939 = vmatpush1.xpose.msra.mxu0 0.0
        %940 = vmatprep.subr.mxu0 0.0
        %941 = vmatpush1.xpose.msra.mxu0 0.0
        %942 = vmatprep.subr.mxu0 0.0
        %943 = vmatpush1.xpose.msra.mxu0 0.0
        %944 = vmatprep.subr.mxu0 0.0
        %945 = vmatpush1.xpose.msra.mxu0 0.0
        %946 = vmatprep.subr.mxu0 0.0
        %947 = vmatpush1.xpose.msra.mxu0 0.0
        %948 = vmatprep.subr.mxu0 0.0
        %949 = vmatpush1.xpose.msra.mxu0 0.0
        %950 = vmatprep.subr.mxu0 0.0
        %951 = vmatpush1.xpose.msra.mxu0 0.0
        %952 = vmatprep.subr.mxu0 0.0
        %953 = vmatpush1.xpose.msra.mxu0 0.0
        %954 = vmatprep.subr.mxu0 0.0
        %955 = vmatpush1.xpose.msra.mxu0 0.0
        %956 = vmatprep.subr.mxu0 0.0
        %957 = vmatpush1.xpose.msra.mxu0 0.0
        %958 = vmatprep.subr.mxu0 0.0
        %959 = vmatpush1.xpose.msra.mxu0 0.0
        %960 = vmatprep.subr.mxu0 0.0
        %961 = vmatpush1.xpose.msra.mxu0 0.0
        %962 = vmatprep.subr.mxu0 0.0
        %963 = vmatpush1.xpose.msra.mxu0 0.0
        %964 = vmatprep.subr.mxu0 0.0
        %965 = vmatpush1.xpose.msra.mxu0 0.0
        %966 = vmatprep.subr.mxu0 0.0
        %967 = vmatpush1.xpose.msra.mxu0 0.0
        %968 = vmatprep.subr.mxu0 0.0
        %969 = vmatpush1.xpose.msra.mxu0 0.0
        %970 = vmatprep.subr.mxu0 0.0
        %971 = vmatpush1.xpose.msra.mxu0 0.0
        %972 = vmatprep.subr.mxu0 0.0
        %973 = vmatpush1.xpose.msra.mxu0 0.0
        %974 = vmatprep.subr.mxu0 0.0
        %975 = vmatpush1.xpose.msra.mxu0 0.0
        %976 = vmatprep.subr.mxu0 0.0
        %977 = vmatpush1.xpose.msra.mxu0 0.0
        %978 = vmatprep.subr.mxu0 0.0
        %979 = vmatpush1.xpose.msra.mxu0 0.0
        %980 = vmatprep.subr.mxu0 0.0
        %981 = vmatpush1.xpose.msra.mxu0 0.0
        %982 = vmatprep.subr.mxu0 0.0
        %983 = vmatpush1.xpose.msra.mxu0 0.0
        %984 = vmatprep.subr.mxu0 0.0
        %985 = vmatpush1.xpose.msra.mxu0 0.0
        %986 = vmatprep.subr.mxu0 0.0
        %987 = vmatpush1.xpose.msra.mxu0 0.0
        %988 = vmatprep.subr.mxu0 0.0
        %989 = vmatpush1.xpose.msra.mxu0 0.0
        %990 = vmatprep.subr.mxu0 0.0
        %991 = vmatpush1.xpose.msra.mxu0 0.0
        %992 = vmatprep.subr.mxu0 0.0
        %993 = vmatpush1.xpose.msra.mxu0 0.0
        %994 = vmatprep.mubr.f32.mxu0 0.0
        %995 = vmatmul.mubr.f32.gmra.mrb[0].mxu0 %v925
        %v996 = vpop.f32.mrb[0].mxu0
        %v997 = vadd.f32 %v921, %v996
        %v998 = vpop.f32.mrb[0].mxu0
        %999 = vdwg.mxu0
        %v1000 = vsel %vm923, %v997, -inf
        %1001 = vmax.xlane.f32.xlu0 %v1000
        %v1002 = vpop.xlane.xlu0 %1001
        %v1003 = vsub.f32 %v997, %v1002
        %v1004 = vmul.f32 %v1003, 1.442695
        %v1005 = vpow.pop %v1004
        %v1006 = vsel %vm923, %v1005, 0.0
        %1007 = vadd.xlane.f32.xlu0 %v1006
        %v1008 = vpop.xlane.xlu0 %1007
        %v1009 = vrcp.pop %v1008
        %v1010 = vmul.f32 %v1005, %v1009
        %v1012 = vsel %vm923, %v1010, 0
        %1014 = vmatprep.subr.mxu0 0.0
        %1015 = vmatpush1.msra.mxu0 %v827
        %1016 = vmatprep.subr.mxu0 0.0
        %1017 = vmatpush1.msra.mxu0 0.0
        %1018 = vmatprep.subr.mxu0 0.0
        %1019 = vmatpush1.msra.mxu0 0.0
        %1020 = vmatprep.subr.mxu0 0.0
        %1021 = vmatpush1.msra.mxu0 0.0
        %1022 = vmatprep.subr.mxu0 0.0
        %1023 = vmatpush1.msra.mxu0 0.0
        %1024 = vmatprep.subr.mxu0 0.0
        %1025 = vmatpush1.msra.mxu0 0.0
        %1026 = vmatprep.subr.mxu0 0.0
        %1027 = vmatpush1.msra.mxu0 0.0
        %1028 = vmatprep.subr.mxu0 0.0
        %1029 = vmatpush1.msra.mxu0 0.0
        %1030 = vmatprep.subr.mxu0 0.0
        %1031 = vmatpush1.msra.mxu0 0.0
        %1032 = vmatprep.subr.mxu0 0.0
        %1033 = vmatpush1.msra.mxu0 0.0
        %1034 = vmatprep.subr.mxu0 0.0
        %1035 = vmatpush1.msra.mxu0 0.0
        %1036 = vmatprep.subr.mxu0 0.0
        %1037 = vmatpush1.msra.mxu0 0.0
        %1038 = vmatprep.subr.mxu0 0.0
        %1039 = vmatpush1.msra.mxu0 0.0
        %1040 = vmatprep.subr.mxu0 0.0
        %1041 = vmatpush1.msra.mxu0 0.0
        %1042 = vmatprep.subr.mxu0 0.0
        %1043 = vmatpush1.msra.mxu0 0.0
        %1044 = vmatprep.subr.mxu0 0.0
        %1045 = vmatpush1.msra.mxu0 0.0
        %1046 = vmatprep.subr.mxu0 0.0
        %1047 = vmatpush1.msra.mxu0 0.0
        %1048 = vmatprep.subr.mxu0 0.0
        %1049 = vmatpush1.msra.mxu0 0.0
        %1050 = vmatprep.subr.mxu0 0.0
        %1051 = vmatpush1.msra.mxu0 0.0
        %1052 = vmatprep.subr.mxu0 0.0
        %1053 = vmatpush1.msra.mxu0 0.0
        %1054 = vmatprep.subr.mxu0 0.0
        %1055 = vmatpush1.msra.mxu0 0.0
        %1056 = vmatprep.subr.mxu0 0.0
        %1057 = vmatpush1.msra.mxu0 0.0
        %1058 = vmatprep.subr.mxu0 0.0
        %1059 = vmatpush1.msra.mxu0 0.0
        %1060 = vmatprep.subr.mxu0 0.0
        %1061 = vmatpush1.msra.mxu0 0.0
        %1062 = vmatprep.subr.mxu0 0.0
        %1063 = vmatpush1.msra.mxu0 0.0
        %1064 = vmatprep.subr.mxu0 0.0
        %1065 = vmatpush1.msra.mxu0 0.0
        %1066 = vmatprep.subr.mxu0 0.0
        %1067 = vmatpush1.msra.mxu0 0.0
        %1068 = vmatprep.subr.mxu0 0.0
        %1069 = vmatpush1.msra.mxu0 0.0
        %1070 = vmatprep.subr.mxu0 0.0
        %1071 = vmatpush1.msra.mxu0 0.0
        %1072 = vmatprep.subr.mxu0 0.0
        %1073 = vmatpush1.msra.mxu0 0.0
        %1074 = vmatprep.subr.mxu0 0.0
        %1075 = vmatpush1.msra.mxu0 0.0
        %1076 = vmatprep.subr.mxu0 0.0
        %1077 = vmatpush1.msra.mxu0 0.0
        %1078 = vmatprep.mubr.f32.mxu0 0.0
        %1079 = vmatmul.mubr.f32.gmra.mrb[0].mxu0 %v1012
        %v1080 = vpop.f32.mrb[0].mxu0
        %v1081 = vadd.f32 0.0, %v1080
        %v1082 = vpop.f32.mrb[0].mxu0
        %1083 = vdwg.mxu0
        %1084 = vst.msk [vmem:[#allocation2] sm:$0xff] %vm923, %v1081
        %1085 = vrot.lane.b32.xlu0 %v915, 120
        %v1086 = vpop.permute.xlu0 %1085
        %1087 = vrot.lane.b32.xlu0 %v742, 120
        %v1088 = vpop.permute.xlu0 %1087
        %v1089 = vsel %vm923, %v1086, 0
        %v1091 = vsel %vm923, %v1088, 0
        %1093 = vmatprep.subr.mxu0 0.0
        %1094 = vmatpush1.xpose.msra.mxu0 %v1091
        %1095 = vmatprep.subr.mxu0 0.0
        %1096 = vmatpush1.xpose.msra.mxu0 0.0
        %1097 = vmatprep.subr.mxu0 0.0
        %1098 = vmatpush1.xpose.msra.mxu0 0.0
        %1099 = vmatprep.subr.mxu0 0.0
        %1100 = vmatpush1.xpose.msra.mxu0 0.0
        %1101 = vmatprep.subr.mxu0 0.0
        %1102 = vmatpush1.xpose.msra.mxu0 0.0
        %1103 = vmatprep.subr.mxu0 0.0
        %1104 = vmatpush1.xpose.msra.mxu0 0.0
        %1105 = vmatprep.subr.mxu0 0.0
        %1106 = vmatpush1.xpose.msra.mxu0 0.0
        %1107 = vmatprep.subr.mxu0 0.0
        %1108 = vmatpush1.xpose.msra.mxu0 0.0
        %1109 = vmatprep.subr.mxu0 0.0
        %1110 = vmatpush1.xpose.msra.mxu0 0.0
        %1111 = vmatprep.subr.mxu0 0.0
        %1112 = vmatpush1.xpose.msra.mxu0 0.0
        %1113 = vmatprep.subr.mxu0 0.0
        %1114 = vmatpush1.xpose.msra.mxu0 0.0
        %1115 = vmatprep.subr.mxu0 0.0
        %1116 = vmatpush1.xpose.msra.mxu0 0.0
        %1117 = vmatprep.subr.mxu0 0.0
        %1118 = vmatpush1.xpose.msra.mxu0 0.0
        %1119 = vmatprep.subr.mxu0 0.0
        %1120 = vmatpush1.xpose.msra.mxu0 0.0
        %1121 = vmatprep.subr.mxu0 0.0
        %1122 = vmatpush1.xpose.msra.mxu0 0.0
        %1123 = vmatprep.subr.mxu0 0.0
        %1124 = vmatpush1.xpose.msra.mxu0 0.0
        %1125 = vmatprep.subr.mxu0 0.0
        %1126 = vmatpush1.xpose.msra.mxu0 0.0
        %1127 = vmatprep.subr.mxu0 0.0
        %1128 = vmatpush1.xpose.msra.mxu0 0.0
        %1129 = vmatprep.subr.mxu0 0.0
        %1130 = vmatpush1.xpose.msra.mxu0 0.0
        %1131 = vmatprep.subr.mxu0 0.0
        %1132 = vmatpush1.xpose.msra.mxu0 0.0
        %1133 = vmatprep.subr.mxu0 0.0
        %1134 = vmatpush1.xpose.msra.mxu0 0.0
        %1135 = vmatprep.subr.mxu0 0.0
        %1136 = vmatpush1.xpose.msra.mxu0 0.0
        %1137 = vmatprep.subr.mxu0 0.0
        %1138 = vmatpush1.xpose.msra.mxu0 0.0
        %1139 = vmatprep.subr.mxu0 0.0
        %1140 = vmatpush1.xpose.msra.mxu0 0.0
        %1141 = vmatprep.subr.mxu0 0.0
        %1142 = vmatpush1.xpose.msra.mxu0 0.0
        %1143 = vmatprep.subr.mxu0 0.0
        %1144 = vmatpush1.xpose.msra.mxu0 0.0
        %1145 = vmatprep.subr.mxu0 0.0
        %1146 = vmatpush1.xpose.msra.mxu0 0.0
        %1147 = vmatprep.subr.mxu0 0.0
        %1148 = vmatpush1.xpose.msra.mxu0 0.0
        %1149 = vmatprep.subr.mxu0 0.0
        %1150 = vmatpush1.xpose.msra.mxu0 0.0
        %1151 = vmatprep.subr.mxu0 0.0
        %1152 = vmatpush1.xpose.msra.mxu0 0.0
        %1153 = vmatprep.subr.mxu0 0.0
        %1154 = vmatpush1.xpose.msra.mxu0 0.0
        %1155 = vmatprep.subr.mxu0 0.0
        %1156 = vmatpush1.xpose.msra.mxu0 0.0
        %1157 = vmatprep.mubr.f32.mxu0 0.0
        %1158 = vmatmul.mubr.f32.gmra.mrb[0].mxu0 %v1089
        %v1159 = vpop.f32.mrb[0].mxu0
        %v1160 = vadd.f32 %v921, %v1159
        %v1161 = vpop.f32.mrb[0].mxu0
        %1162 = vdwg.mxu0
        %v1163 = vsel %vm923, %v1160, -inf
        %1164 = vmax.xlane.f32.xlu0 %v1163
        %v1165 = vpop.xlane.xlu0 %1164
        %v1166 = vsub.f32 %v1160, %v1165
        %v1167 = vmul.f32 %v1166, 1.442695
        %v1168 = vpow.pop %v1167
        %v1169 = vsel %vm923, %v1168, 0.0
        %1170 = vadd.xlane.f32.xlu0 %v1169
        %v1171 = vpop.xlane.xlu0 %1170
        %v1172 = vrcp.pop %v1171
        %v1173 = vmul.f32 %v1168, %v1172
        %1175 = vrot.lane.b32.xlu0 %v827, 120
        %v1176 = vpop.permute.xlu0 %1175
        %v1179 = vsel %vm923, %v1173, 0
        %1181 = vmatprep.subr.mxu0 0.0
        %1182 = vmatpush1.msra.mxu0 %v1176
        %1183 = vmatprep.subr.mxu0 0.0
        %1184 = vmatpush1.msra.mxu0 0.0
        %1185 = vmatprep.subr.mxu0 0.0
        %1186 = vmatpush1.msra.mxu0 0.0
        %1187 = vmatprep.subr.mxu0 0.0
        %1188 = vmatpush1.msra.mxu0 0.0
        %1189 = vmatprep.subr.mxu0 0.0
        %1190 = vmatpush1.msra.mxu0 0.0
        %1191 = vmatprep.subr.mxu0 0.0
        %1192 = vmatpush1.msra.mxu0 0.0
        %1193 = vmatprep.subr.mxu0 0.0
        %1194 = vmatpush1.msra.mxu0 0.0
        %1195 = vmatprep.subr.mxu0 0.0
        %1196 = vmatpush1.msra.mxu0 0.0
        %1197 = vmatprep.subr.mxu0 0.0
        %1198 = vmatpush1.msra.mxu0 0.0
        %1199 = vmatprep.subr.mxu0 0.0
        %1200 = vmatpush1.msra.mxu0 0.0
        %1201 = vmatprep.subr.mxu0 0.0
        %1202 = vmatpush1.msra.mxu0 0.0
        %1203 = vmatprep.subr.mxu0 0.0
        %1204 = vmatpush1.msra.mxu0 0.0
        %1205 = vmatprep.subr.mxu0 0.0
        %1206 = vmatpush1.msra.mxu0 0.0
        %1207 = vmatprep.subr.mxu0 0.0
        %1208 = vmatpush1.msra.mxu0 0.0
        %1209 = vmatprep.subr.mxu0 0.0
        %1210 = vmatpush1.msra.mxu0 0.0
        %1211 = vmatprep.subr.mxu0 0.0
        %1212 = vmatpush1.msra.mxu0 0.0
        %1213 = vmatprep.subr.mxu0 0.0
        %1214 = vmatpush1.msra.mxu0 0.0
        %1215 = vmatprep.subr.mxu0 0.0
        %1216 = vmatpush1.msra.mxu0 0.0
        %1217 = vmatprep.subr.mxu0 0.0
        %1218 = vmatpush1.msra.mxu0 0.0
        %1219 = vmatprep.subr.mxu0 0.0
        %1220 = vmatpush1.msra.mxu0 0.0
        %1221 = vmatprep.subr.mxu0 0.0
        %1222 = vmatpush1.msra.mxu0 0.0
        %1223 = vmatprep.subr.mxu0 0.0
        %1224 = vmatpush1.msra.mxu0 0.0
        %1225 = vmatprep.subr.mxu0 0.0
        %1226 = vmatpush1.msra.mxu0 0.0
        %1227 = vmatprep.subr.mxu0 0.0
        %1228 = vmatpush1.msra.mxu0 0.0
        %1229 = vmatprep.subr.mxu0 0.0
        %1230 = vmatpush1.msra.mxu0 0.0
        %1231 = vmatprep.subr.mxu0 0.0
        %1232 = vmatpush1.msra.mxu0 0.0
        %1233 = vmatprep.subr.mxu0 0.0
        %1234 = vmatpush1.msra.mxu0 0.0
        %1235 = vmatprep.subr.mxu0 0.0
        %1236 = vmatpush1.msra.mxu0 0.0
        %1237 = vmatprep.subr.mxu0 0.0
        %1238 = vmatpush1.msra.mxu0 0.0
        %1239 = vmatprep.subr.mxu0 0.0
        %1240 = vmatpush1.msra.mxu0 0.0
        %1241 = vmatprep.subr.mxu0 0.0
        %1242 = vmatpush1.msra.mxu0 0.0
        %1243 = vmatprep.subr.mxu0 0.0
        %1244 = vmatpush1.msra.mxu0 0.0
        %1245 = vmatprep.mubr.f32.mxu0 0.0
        %1246 = vmatmul.mubr.f32.gmra.mrb[0].mxu0 %v1179
        %v1247 = vpop.f32.mrb[0].mxu0
        %v1248 = vadd.f32 0.0, %v1247
        %v1249 = vpop.f32.mrb[0].mxu0
        %1250 = vdwg.mxu0
        %1252 = vrot.lane.b32.xlu0 %v1248, 8
        %v1253 = vpop.permute.xlu0 %1252
        %vm1255 = vcmask 130112
        %1256 = vst.msk [vmem:[#allocation2] sm:$0xff] %vm1255, %v1253
        %1257 = vrot.lane.b32.xlu0 %v915, 112
        %v1258 = vpop.permute.xlu0 %1257
        %1259 = vrot.lane.b32.xlu0 %v742, 112
        %v1260 = vpop.permute.xlu0 %1259
        %v1261 = vsel %vm923, %v1258, 0
        %v1263 = vsel %vm923, %v1260, 0
        %1265 = vmatprep.subr.mxu0 0.0
        %1266 = vmatpush1.xpose.msra.mxu0 %v1263
        %1267 = vmatprep.subr.mxu0 0.0
        %1268 = vmatpush1.xpose.msra.mxu0 0.0
        %1269 = vmatprep.subr.mxu0 0.0
        %1270 = vmatpush1.xpose.msra.mxu0 0.0
        %1271 = vmatprep.subr.mxu0 0.0
        %1272 = vmatpush1.xpose.msra.mxu0 0.0
        %1273 = vmatprep.subr.mxu0 0.0
        %1274 = vmatpush1.xpose.msra.mxu0 0.0
        %1275 = vmatprep.subr.mxu0 0.0
        %1276 = vmatpush1.xpose.msra.mxu0 0.0
        %1277 = vmatprep.subr.mxu0 0.0
        %1278 = vmatpush1.xpose.msra.mxu0 0.0
        %1279 = vmatprep.subr.mxu0 0.0
        %1280 = vmatpush1.xpose.msra.mxu0 0.0
        %1281 = vmatprep.subr.mxu0 0.0
        %1282 = vmatpush1.xpose.msra.mxu0 0.0
        %1283 = vmatprep.subr.mxu0 0.0
        %1284 = vmatpush1.xpose.msra.mxu0 0.0
        %1285 = vmatprep.subr.mxu0 0.0
        %1286 = vmatpush1.xpose.msra.mxu0 0.0
        %1287 = vmatprep.subr.mxu0 0.0
        %1288 = vmatpush1.xpose.msra.mxu0 0.0
        %1289 = vmatprep.subr.mxu0 0.0
        %1290 = vmatpush1.xpose.msra.mxu0 0.0
        %1291 = vmatprep.subr.mxu0 0.0
        %1292 = vmatpush1.xpose.msra.mxu0 0.0
        %1293 = vmatprep.subr.mxu0 0.0
        %1294 = vmatpush1.xpose.msra.mxu0 0.0
        %1295 = vmatprep.subr.mxu0 0.0
        %1296 = vmatpush1.xpose.msra.mxu0 0.0
        %1297 = vmatprep.subr.mxu0 0.0
        %1298 = vmatpush1.xpose.msra.mxu0 0.0
        %1299 = vmatprep.subr.mxu0 0.0
        %1300 = vmatpush1.xpose.msra.mxu0 0.0
        %1301 = vmatprep.subr.mxu0 0.0
        %1302 = vmatpush1.xpose.msra.mxu0 0.0
        %1303 = vmatprep.subr.mxu0 0.0
        %1304 = vmatpush1.xpose.msra.mxu0 0.0
        %1305 = vmatprep.subr.mxu0 0.0
        %1306 = vmatpush1.xpose.msra.mxu0 0.0
        %1307 = vmatprep.subr.mxu0 0.0
        %1308 = vmatpush1.xpose.msra.mxu0 0.0
        %1309 = vmatprep.subr.mxu0 0.0
        %1310 = vmatpush1.xpose.msra.mxu0 0.0
        %1311 = vmatprep.subr.mxu0 0.0
        %1312 = vmatpush1.xpose.msra.mxu0 0.0
        %1313 = vmatprep.subr.mxu0 0.0
        %1314 = vmatpush1.xpose.msra.mxu0 0.0
        %1315 = vmatprep.subr.mxu0 0.0
        %1316 = vmatpush1.xpose.msra.mxu0 0.0
        %1317 = vmatprep.subr.mxu0 0.0
        %1318 = vmatpush1.xpose.msra.mxu0 0.0
        %1319 = vmatprep.subr.mxu0 0.0
        %1320 = vmatpush1.xpose.msra.mxu0 0.0
        %1321 = vmatprep.subr.mxu0 0.0
        %1322 = vmatpush1.xpose.msra.mxu0 0.0
        %1323 = vmatprep.subr.mxu0 0.0
        %1324 = vmatpush1.xpose.msra.mxu0 0.0
        %1325 = vmatprep.subr.mxu0 0.0
        %1326 = vmatpush1.xpose.msra.mxu0 0.0
        %1327 = vmatprep.subr.mxu0 0.0
        %1328 = vmatpush1.xpose.msra.mxu0 0.0
        %1329 = vmatprep.mubr.f32.mxu0 0.0
        %1330 = vmatmul.mubr.f32.gmra.mrb[0].mxu0 %v1261
        %v1331 = vpop.f32.mrb[0].mxu0
        %v1332 = vadd.f32 %v921, %v1331
        %v1333 = vpop.f32.mrb[0].mxu0
        %1334 = vdwg.mxu0
        %v1335 = vsel %vm923, %v1332, -inf
        %1336 = vmax.xlane.f32.xlu0 %v1335
        %v1337 = vpop.xlane.xlu0 %1336
        %v1338 = vsub.f32 %v1332, %v1337
        %v1339 = vmul.f32 %v1338, 1.442695
        %v1340 = vpow.pop %v1339
        %v1341 = vsel %vm923, %v1340, 0.0
        %1342 = vadd.xlane.f32.xlu0 %v1341
        %v1343 = vpop.xlane.xlu0 %1342
        %v1344 = vrcp.pop %v1343
        %v1345 = vmul.f32 %v1340, %v1344
        %1346 = vrot.lane.b32.xlu0 %v827, 112
        %v1347 = vpop.permute.xlu0 %1346
        %v1350 = vsel %vm923, %v1345, 0
        %1352 = vmatprep.subr.mxu0 0.0
        %1353 = vmatpush1.msra.mxu0 %v1347
        %1354 = vmatprep.subr.mxu0 0.0
        %1355 = vmatpush1.msra.mxu0 0.0
        %1356 = vmatprep.subr.mxu0 0.0
        %1357 = vmatpush1.msra.mxu0 0.0
        %1358 = vmatprep.subr.mxu0 0.0
        %1359 = vmatpush1.msra.mxu0 0.0
        %1360 = vmatprep.subr.mxu0 0.0
        %1361 = vmatpush1.msra.mxu0 0.0
        %1362 = vmatprep.subr.mxu0 0.0
        %1363 = vmatpush1.msra.mxu0 0.0
        %1364 = vmatprep.subr.mxu0 0.0
        %1365 = vmatpush1.msra.mxu0 0.0
        %1366 = vmatprep.subr.mxu0 0.0
        %1367 = vmatpush1.msra.mxu0 0.0
        %1368 = vmatprep.subr.mxu0 0.0
        %1369 = vmatpush1.msra.mxu0 0.0
        %1370 = vmatprep.subr.mxu0 0.0
        %1371 = vmatpush1.msra.mxu0 0.0
        %1372 = vmatprep.subr.mxu0 0.0
        %1373 = vmatpush1.msra.mxu0 0.0
        %1374 = vmatprep.subr.mxu0 0.0
        %1375 = vmatpush1.msra.mxu0 0.0
        %1376 = vmatprep.subr.mxu0 0.0
        %1377 = vmatpush1.msra.mxu0 0.0
        %1378 = vmatprep.subr.mxu0 0.0
        %1379 = vmatpush1.msra.mxu0 0.0
        %1380 = vmatprep.subr.mxu0 0.0
        %1381 = vmatpush1.msra.mxu0 0.0
        %1382 = vmatprep.subr.mxu0 0.0
        %1383 = vmatpush1.msra.mxu0 0.0
        %1384 = vmatprep.subr.mxu0 0.0
        %1385 = vmatpush1.msra.mxu0 0.0
        %1386 = vmatprep.subr.mxu0 0.0
        %1387 = vmatpush1.msra.mxu0 0.0
        %1388 = vmatprep.subr.mxu0 0.0
        %1389 = vmatpush1.msra.mxu0 0.0
        %1390 = vmatprep.subr.mxu0 0.0
        %1391 = vmatpush1.msra.mxu0 0.0
        %1392 = vmatprep.subr.mxu0 0.0
        %1393 = vmatpush1.msra.mxu0 0.0
        %1394 = vmatprep.subr.mxu0 0.0
        %1395 = vmatpush1.msra.mxu0 0.0
        %1396 = vmatprep.subr.mxu0 0.0
        %1397 = vmatpush1.msra.mxu0 0.0
        %1398 = vmatprep.subr.mxu0 0.0
        %1399 = vmatpush1.msra.mxu0 0.0
        %1400 = vmatprep.subr.mxu0 0.0
        %1401 = vmatpush1.msra.mxu0 0.0
        %1402 = vmatprep.subr.mxu0 0.0
        %1403 = vmatpush1.msra.mxu0 0.0
        %1404 = vmatprep.subr.mxu0 0.0
        %1405 = vmatpush1.msra.mxu0 0.0
        %1406 = vmatprep.subr.mxu0 0.0
        %1407 = vmatpush1.msra.mxu0 0.0
        %1408 = vmatprep.subr.mxu0 0.0
        %1409 = vmatpush1.msra.mxu0 0.0
        %1410 = vmatprep.subr.mxu0 0.0
        %1411 = vmatpush1.msra.mxu0 0.0
        %1412 = vmatprep.subr.mxu0 0.0
        %1413 = vmatpush1.msra.mxu0 0.0
        %1414 = vmatprep.subr.mxu0 0.0
        %1415 = vmatpush1.msra.mxu0 0.0
        %1416 = vmatprep.mubr.f32.mxu0 0.0
        %1417 = vmatmul.mubr.f32.gmra.mrb[0].mxu0 %v1350
        %v1418 = vpop.f32.mrb[0].mxu0
        %v1419 = vadd.f32 0.0, %v1418
        %v1420 = vpop.f32.mrb[0].mxu0
        %1421 = vdwg.mxu0
        %1423 = vrot.lane.b32.xlu0 %v1419, 16
        %v1424 = vpop.permute.xlu0 %1423
        %vm1426 = vcmask 195712
        %1427 = vst.msk [vmem:[#allocation2] sm:$0xff] %vm1426, %v1424
        %1428 = vrot.lane.b32.xlu0 %v915, 104
        %v1429 = vpop.permute.xlu0 %1428
        %1430 = vrot.lane.b32.xlu0 %v742, 104
        %v1431 = vpop.permute.xlu0 %1430
        %v1432 = vsel %vm923, %v1429, 0
        %v1434 = vsel %vm923, %v1431, 0
        %1436 = vmatprep.subr.mxu0 0.0
        %1437 = vmatpush1.xpose.msra.mxu0 %v1434
        %1438 = vmatprep.subr.mxu0 0.0
        %1439 = vmatpush1.xpose.msra.mxu0 0.0
        %1440 = vmatprep.subr.mxu0 0.0
        %1441 = vmatpush1.xpose.msra.mxu0 0.0
        %1442 = vmatprep.subr.mxu0 0.0
        %1443 = vmatpush1.xpose.msra.mxu0 0.0
        %1444 = vmatprep.subr.mxu0 0.0
        %1445 = vmatpush1.xpose.msra.mxu0 0.0
        %1446 = vmatprep.subr.mxu0 0.0
        %1447 = vmatpush1.xpose.msra.mxu0 0.0
        %1448 = vmatprep.subr.mxu0 0.0
        %1449 = vmatpush1.xpose.msra.mxu0 0.0
        %1450 = vmatprep.subr.mxu0 0.0
        %1451 = vmatpush1.xpose.msra.mxu0 0.0
        %1452 = vmatprep.subr.mxu0 0.0
        %1453 = vmatpush1.xpose.msra.mxu0 0.0
        %1454 = vmatprep.subr.mxu0 0.0
        %1455 = vmatpush1.xpose.msra.mxu0 0.0
        %1456 = vmatprep.subr.mxu0 0.0
        %1457 = vmatpush1.xpose.msra.mxu0 0.0
        %1458 = vmatprep.subr.mxu0 0.0
        %1459 = vmatpush1.xpose.msra.mxu0 0.0
        %1460 = vmatprep.subr.mxu0 0.0
        %1461 = vmatpush1.xpose.msra.mxu0 0.0
        %1462 = vmatprep.subr.mxu0 0.0
        %1463 = vmatpush1.xpose.msra.mxu0 0.0
        %1464 = vmatprep.subr.mxu0 0.0
        %1465 = vmatpush1.xpose.msra.mxu0 0.0
        %1466 = vmatprep.subr.mxu0 0.0
        %1467 = vmatpush1.xpose.msra.mxu0 0.0
        %1468 = vmatprep.subr.mxu0 0.0
        %1469 = vmatpush1.xpose.msra.mxu0 0.0
        %1470 = vmatprep.subr.mxu0 0.0
        %1471 = vmatpush1.xpose.msra.mxu0 0.0
        %1472 = vmatprep.subr.mxu0 0.0
        %1473 = vmatpush1.xpose.msra.mxu0 0.0
        %1474 = vmatprep.subr.mxu0 0.0
        %1475 = vmatpush1.xpose.msra.mxu0 0.0
        %1476 = vmatprep.subr.mxu0 0.0
        %1477 = vmatpush1.xpose.msra.mxu0 0.0
        %1478 = vmatprep.subr.mxu0 0.0
        %1479 = vmatpush1.xpose.msra.mxu0 0.0
        %1480 = vmatprep.subr.mxu0 0.0
        %1481 = vmatpush1.xpose.msra.mxu0 0.0
        %1482 = vmatprep.subr.mxu0 0.0
        %1483 = vmatpush1.xpose.msra.mxu0 0.0
        %1484 = vmatprep.subr.mxu0 0.0
        %1485 = vmatpush1.xpose.msra.mxu0 0.0
        %1486 = vmatprep.subr.mxu0 0.0
        %1487 = vmatpush1.xpose.msra.mxu0 0.0
        %1488 = vmatprep.subr.mxu0 0.0
        %1489 = vmatpush1.xpose.msra.mxu0 0.0
        %1490 = vmatprep.subr.mxu0 0.0
        %1491 = vmatpush1.xpose.msra.mxu0 0.0
        %1492 = vmatprep.subr.mxu0 0.0
        %1493 = vmatpush1.xpose.msra.mxu0 0.0
        %1494 = vmatprep.subr.mxu0 0.0
        %1495 = vmatpush1.xpose.msra.mxu0 0.0
        %1496 = vmatprep.subr.mxu0 0.0
        %1497 = vmatpush1.xpose.msra.mxu0 0.0
        %1498 = vmatprep.subr.mxu0 0.0
        %1499 = vmatpush1.xpose.msra.mxu0 0.0
        %1500 = vmatprep.mubr.f32.mxu0 0.0
        %1501 = vmatmul.mubr.f32.gmra.mrb[0].mxu0 %v1432
        %v1502 = vpop.f32.mrb[0].mxu0
        %v1503 = vadd.f32 %v921, %v1502
        %v1504 = vpop.f32.mrb[0].mxu0
        %1505 = vdwg.mxu0
        %v1506 = vsel %vm923, %v1503, -inf
        %1507 = vmax.xlane.f32.xlu0 %v1506
        %v1508 = vpop.xlane.xlu0 %1507
        %v1509 = vsub.f32 %v1503, %v1508
        %v1510 = vmul.f32 %v1509, 1.442695
        %v1511 = vpow.pop %v1510
        %v1512 = vsel %vm923, %v1511, 0.0
        %1513 = vadd.xlane.f32.xlu0 %v1512
        %v1514 = vpop.xlane.xlu0 %1513
        %v1515 = vrcp.pop %v1514
        %v1516 = vmul.f32 %v1511, %v1515
        %1517 = vrot.lane.b32.xlu0 %v827, 104
        %v1518 = vpop.permute.xlu0 %1517
        %v1521 = vsel %vm923, %v1516, 0
        %1523 = vmatprep.subr.mxu0 0.0
        %1524 = vmatpush1.msra.mxu0 %v1518
        %1525 = vmatprep.subr.mxu0 0.0
        %1526 = vmatpush1.msra.mxu0 0.0
        %1527 = vmatprep.subr.mxu0 0.0
        %1528 = vmatpush1.msra.mxu0 0.0
        %1529 = vmatprep.subr.mxu0 0.0
        %1530 = vmatpush1.msra.mxu0 0.0
        %1531 = vmatprep.subr.mxu0 0.0
        %1532 = vmatpush1.msra.mxu0 0.0
        %1533 = vmatprep.subr.mxu0 0.0
        %1534 = vmatpush1.msra.mxu0 0.0
        %1535 = vmatprep.subr.mxu0 0.0
        %1536 = vmatpush1.msra.mxu0 0.0
        %1537 = vmatprep.subr.mxu0 0.0
        %1538 = vmatpush1.msra.mxu0 0.0
        %1539 = vmatprep.subr.mxu0 0.0
        %1540 = vmatpush1.msra.mxu0 0.0
        %1541 = vmatprep.subr.mxu0 0.0
        %1542 = vmatpush1.msra.mxu0 0.0
        %1543 = vmatprep.subr.mxu0 0.0
        %1544 = vmatpush1.msra.mxu0 0.0
        %1545 = vmatprep.subr.mxu0 0.0
        %1546 = vmatpush1.msra.mxu0 0.0
        %1547 = vmatprep.subr.mxu0 0.0
        %1548 = vmatpush1.msra.mxu0 0.0
        %1549 = vmatprep.subr.mxu0 0.0
        %1550 = vmatpush1.msra.mxu0 0.0
        %1551 = vmatprep.subr.mxu0 0.0
        %1552 = vmatpush1.msra.mxu0 0.0
        %1553 = vmatprep.subr.mxu0 0.0
        %1554 = vmatpush1.msra.mxu0 0.0
        %1555 = vmatprep.subr.mxu0 0.0
        %1556 = vmatpush1.msra.mxu0 0.0
        %1557 = vmatprep.subr.mxu0 0.0
        %1558 = vmatpush1.msra.mxu0 0.0
        %1559 = vmatprep.subr.mxu0 0.0
        %1560 = vmatpush1.msra.mxu0 0.0
        %1561 = vmatprep.subr.mxu0 0.0
        %1562 = vmatpush1.msra.mxu0 0.0
        %1563 = vmatprep.subr.mxu0 0.0
        %1564 = vmatpush1.msra.mxu0 0.0
        %1565 = vmatprep.subr.mxu0 0.0
        %1566 = vmatpush1.msra.mxu0 0.0
        %1567 = vmatprep.subr.mxu0 0.0
        %1568 = vmatpush1.msra.mxu0 0.0
        %1569 = vmatprep.subr.mxu0 0.0
        %1570 = vmatpush1.msra.mxu0 0.0
        %1571 = vmatprep.subr.mxu0 0.0
        %1572 = vmatpush1.msra.mxu0 0.0
        %1573 = vmatprep.subr.mxu0 0.0
        %1574 = vmatpush1.msra.mxu0 0.0
        %1575 = vmatprep.subr.mxu0 0.0
        %1576 = vmatpush1.msra.mxu0 0.0
        %1577 = vmatprep.subr.mxu0 0.0
        %1578 = vmatpush1.msra.mxu0 0.0
        %1579 = vmatprep.subr.mxu0 0.0
        %1580 = vmatpush1.msra.mxu0 0.0
        %1581 = vmatprep.subr.mxu0 0.0
        %1582 = vmatpush1.msra.mxu0 0.0
        %1583 = vmatprep.subr.mxu0 0.0
        %1584 = vmatpush1.msra.mxu0 0.0
        %1585 = vmatprep.subr.mxu0 0.0
        %1586 = vmatpush1.msra.mxu0 0.0
        %1587 = vmatprep.mubr.f32.mxu0 0.0
        %1588 = vmatmul.mubr.f32.gmra.mrb[0].mxu0 %v1521
        %v1589 = vpop.f32.mrb[0].mxu0
        %v1590 = vadd.f32 0.0, %v1589
        %v1591 = vpop.f32.mrb[0].mxu0
        %1592 = vdwg.mxu0
        %1594 = vrot.lane.b32.xlu0 %v1590, 24
        %v1595 = vpop.permute.xlu0 %1594
        %vm1597 = vcmask 261312
        %1598 = vst.msk [vmem:[#allocation2] sm:$0xff] %vm1597, %v1595
        %v1599 = vld [vmem:[#allocation2] sm:$0xff]
        %v1600 = vld [vmem:[#allocation20] sm:$0xff]
        %v1601 = vld [vmem:[#allocation20 + $0x8] sm:$0xff]
        %v1602 = vld [vmem:[#allocation20 + $0x10] sm:$0xff]
        %v1603 = vld [vmem:[#allocation20 + $0x18] sm:$0xff]
        %v1604 = vld [vmem:[#allocation21] sm:$0x1]
        %v1606 = vlaneseq
        %v1607 = vshrl.u32 %v1606, 7
        %v1608 = vsub.s32 0, %v1607
        %v1609 = vrot.slane %v1604, %v1608
        %v1612 = vsel %vm671, %v1599, 0
        %1614 = vmatprep.subr.mxu0 0.0
        %1615 = vmatpush1.msra.mxu0 %v1600
        %1616 = vmatprep.subr.mxu0 0.0
        %1617 = vmatpush1.msra.mxu0 %v1601
        %1618 = vmatprep.subr.mxu0 0.0
        %1619 = vmatpush1.msra.mxu0 %v1602
        %1620 = vmatprep.subr.mxu0 0.0
        %1621 = vmatpush1.msra.mxu0 %v1603
        %1622 = vmatprep.subr.mxu0 0.0
        %1623 = vmatpush1.msra.mxu0 0.0
        %1624 = vmatprep.subr.mxu0 0.0
        %1625 = vmatpush1.msra.mxu0 0.0
        %1626 = vmatprep.subr.mxu0 0.0
        %1627 = vmatpush1.msra.mxu0 0.0
        %1628 = vmatprep.subr.mxu0 0.0
        %1629 = vmatpush1.msra.mxu0 0.0
        %1630 = vmatprep.subr.mxu0 0.0
        %1631 = vmatpush1.msra.mxu0 0.0
        %1632 = vmatprep.subr.mxu0 0.0
        %1633 = vmatpush1.msra.mxu0 0.0
        %1634 = vmatprep.subr.mxu0 0.0
        %1635 = vmatpush1.msra.mxu0 0.0
        %1636 = vmatprep.subr.mxu0 0.0
        %1637 = vmatpush1.msra.mxu0 0.0
        %1638 = vmatprep.subr.mxu0 0.0
        %1639 = vmatpush1.msra.mxu0 0.0
        %1640 = vmatprep.subr.mxu0 0.0
        %1641 = vmatpush1.msra.mxu0 0.0
        %1642 = vmatprep.subr.mxu0 0.0
        %1643 = vmatpush1.msra.mxu0 0.0
        %1644 = vmatprep.subr.mxu0 0.0
        %1645 = vmatpush1.msra.mxu0 0.0
        %1646 = vmatprep.subr.mxu0 0.0
        %1647 = vmatpush1.msra.mxu0 0.0
        %1648 = vmatprep.subr.mxu0 0.0
        %1649 = vmatpush1.msra.mxu0 0.0
        %1650 = vmatprep.subr.mxu0 0.0
        %1651 = vmatpush1.msra.mxu0 0.0
        %1652 = vmatprep.subr.mxu0 0.0
        %1653 = vmatpush1.msra.mxu0 0.0
        %1654 = vmatprep.subr.mxu0 0.0
        %1655 = vmatpush1.msra.mxu0 0.0
        %1656 = vmatprep.subr.mxu0 0.0
        %1657 = vmatpush1.msra.mxu0 0.0
        %1658 = vmatprep.subr.mxu0 0.0
        %1659 = vmatpush1.msra.mxu0 0.0
        %1660 = vmatprep.subr.mxu0 0.0
        %1661 = vmatpush1.msra.mxu0 0.0
        %1662 = vmatprep.subr.mxu0 0.0
        %1663 = vmatpush1.msra.mxu0 0.0
        %1664 = vmatprep.subr.mxu0 0.0
        %1665 = vmatpush1.msra.mxu0 0.0
        %1666 = vmatprep.subr.mxu0 0.0
        %1667 = vmatpush1.msra.mxu0 0.0
        %1668 = vmatprep.subr.mxu0 0.0
        %1669 = vmatpush1.msra.mxu0 0.0
        %1670 = vmatprep.subr.mxu0 0.0
        %1671 = vmatpush1.msra.mxu0 0.0
        %1672 = vmatprep.subr.mxu0 0.0
        %1673 = vmatpush1.msra.mxu0 0.0
        %1674 = vmatprep.subr.mxu0 0.0
        %1675 = vmatpush1.msra.mxu0 0.0
        %1676 = vmatprep.subr.mxu0 0.0
        %1677 = vmatpush1.msra.mxu0 0.0
        %1678 = vmatprep.mubr.f32.mxu0 0.0
        %1679 = vmatmul.mubr.f32.gmra.mrb[0].mxu0 %v1612
        %v1680 = vpop.f32.mrb[0].mxu0
        %v1681 = vadd.f32 %v1609, %v1680
        %v1682 = vpop.f32.mrb[0].mxu0
        %1683 = vdwg.mxu0
        %1684 = vst.msk [vmem:[%s658] sm:$0xff] %vm671, %v1681
        %s1685 = sand.u32 %s335, 1
        %s1686 = scalar_lea.sflag [#allocation5], %s1685
        %s1687 = sand.u32 %s335, 1
        %s1688 = smul.addr %s1687, 8
        %s1689 = scalar_lea.vmem [#allocation23], %s1688
        // Predicated region
        $region117: #{tpu_custom_call.1} parent=67 // pred_check
          %p1690 = pneg %p345
        $region118: #{tpu_custom_call.1} parent=67 // pred_check_branch
          %1692 = sbr.rel (%p1690) target = $region120
        $region119: #{tpu_custom_call.1} parent=67 // pred_region
          %s1694 = ssub.s32 128, 128
          %1695 = vsyncadd %s1686, %s1694
          %s1696 = sadd.s32 %s44, %s43
          %s1697 = smul.addr %s1696, 128
          %s1698 = scalar_lea.hbm %s12, %s1697
          %s1700 = sshll.u32 %s1689, 4
          %s1701 = int_to_ptr.vmem [resolvable:$true] %s1700
          %1703 = dma.vmem_to_hbm [thread:$0]  %s1701, 128, %s1698, %s1686
        $region120: #{tpu_custom_call.1} parent=67 // pred_fallthru
          _
      $region68: #{tpu_custom_call.1} parent=5 // pred_fallthru
        _
      %p1704 = scmp.le.s32.totalorder 2, %s34
      // Predicated region
      $region121: #{tpu_custom_call.1} parent=5 // pred_check
        %p1705 = pneg %p1704
      $region122: #{tpu_custom_call.1} parent=5 // pred_check_branch
        %1707 = sbr.rel (%p1705) target = $region124
      $region123: #{tpu_custom_call.1} parent=5 // pred_region
        %s1708 = ssub.s32 %s34, 2
        // Predicated region
        $region125: #{tpu_custom_call.1} parent=123 // pred_check
          %p1709 = pneg %p351
        $region126: #{tpu_custom_call.1} parent=123 // pred_check_branch
          %1711 = sbr.rel (%p1709) target = $region128
        $region127: #{tpu_custom_call.1} parent=123 // pred_region
          %s1712 = sand.u32 %s336, 1
          %s1713 = scalar_lea.sflag [#allocation5], %s1712
          %s1714 = sand.u32 %s336, 1
          %s1715 = smul.addr %s1714, 8
          %s1716 = scalar_lea.vmem [#allocation23], %s1715
          %1717 = dma.done %s1713, 128
        $region128: #{tpu_custom_call.1} parent=123 // pred_fallthru
          _
      $region124: #{tpu_custom_call.1} parent=5 // pred_fallthru
        _
    $region6: #{tpu_custom_call.1} parent=1 // loop_footer
      %s38 = sadd.s32 1, %s34
    $region7: #{tpu_custom_call.1} parent=1 // loop_footer_branch
      %33 = sbr.rel target = $region3
    $region8: #{tpu_custom_call.1} parent=1 // loop_exit
      _
    %1718 = vsyncpa [#allocation4], 1
    %s1719 = scalar_lea.sflag [#allocation4], 1
    %1720 = vsyncpa %s1719, 1
    %1721 = vsyncpa [#allocation7], 1
    %s1722 = scalar_lea.sflag [#allocation7], 1
    %1723 = vsyncpa %s1722, 1
    %1724 = vsyncpa [#allocation10], 1
    %s1725 = scalar_lea.sflag [#allocation10], 1
    %1726 = vsyncpa %s1725, 1
    %1727 = vsyncpa [#allocation13], 1
    %1728 = vsyncpa [#allocation16], 1
    %1729 = vsyncpa [#allocation19], 1
    %1730 = vsyncpa [#allocation22], 1
    %1731 = vsyncpa [#allocation5], 1
    %s1732 = scalar_lea.sflag [#allocation5], 1
    %1733 = vsyncpa %s1732, 1

</llo_original>
